<compile_context>
chip_gen: v6e
topology: v6e:2x2x1
jax: 0.10.0
libtpu: 0.0.40
codegen_flags: <defaults>
</compile_context>

<pallas_src>
import functools

import numpy as np
import jax
import jax.numpy as jnp
from jax.experimental import pallas as pl
from jax.experimental.pallas import tpu as pltpu


def _round_up(x, m):
    return (x + m - 1) // m * m


# ---------------------------------------------------------------------------
# One-time weight packing (numpy, at init; the weights are tiny).
#
# conv1 is evaluated parity-decomposed: for output parity (py, px) we produce
#   Y[py,px][r, c, :] = conv1(x)[2r-1+py, 2c-1+px, :]      (0 out of range)
# which is exactly the pixel-unshuffled-by-2, zero-padded-by-1 layout conv2
# needs.  Written against the s2d-by-4 input xq (xq pixel (R,C) holds the
# 4x4 input block starting at padded row 4R / col 4C, slot = (a*4+b)*Cin+ci),
# each parity needs only the (1+py)*(1+px) windows (dr, dc) in {0,1}^2 and a
# (16*Cin, Cmid) weight per window with the original 3x3 taps scattered into
# the right slots (zeros elsewhere).
# ---------------------------------------------------------------------------
def _pack_conv1_weights(w1, cin, cmid):
    """(Cmid, Cin, 3, 3) -> (4 parities, 4 windows, 16*Cin, Cmid) bf16."""
    w1 = np.asarray(w1, np.float32)
    out = np.zeros((4, 4, 16 * cin, cmid), np.float32)
    for py in (0, 1):
        for px in (0, 1):
            pp = py * 2 + px
            for dr in (0, 1):
                for dc in (0, 1):
                    w = dr * 2 + dc
                    for a in range(4):
                        for b in range(4):
                            ky = 4 * dr + a - 2 * py
                            kx = 4 * dc + b - 2 * px
                            if 0 <= ky <= 2 and 0 <= kx <= 2:
                                k0 = (a * 4 + b) * cin
                                out[pp, w, k0:k0 + cin, :] = w1[:, :, ky, kx].T
    return jnp.asarray(out, jnp.bfloat16)


def _pack_conv2_weights(w2, cmid, cout):
    """(Cout, Cmid, 3, 3) -> (9 taps, Cmid, Cout) bf16."""
    w2 = np.asarray(w2, np.float32)
    out = np.zeros((9, cmid, cout), np.float32)
    for ky in range(3):
        for kx in range(3):
            out[ky * 3 + kx] = w2[:, :, ky, kx].T
    return jnp.asarray(out, jnp.bfloat16)


# ---------------------------------------------------------------------------
# Fused kernel: one batch element per grid step.
# Spatial dims are kept flattened (row-major, width Wq) so every slab access
# is a plain 2-D pl.ds window and every matmul is a plain 2-D dot (no
# in-kernel reshapes / transposes / strided loads).
# ---------------------------------------------------------------------------
def _fused_tokenizer_kernel(xq_ref, w1q_ref, b1_ref, w2q_ref, b2_ref, o_ref,
                            y_scr, *, H1, W1, H2, W2, Wq):
    cmid = y_scr.shape[-1]
    cout = o_ref.shape[-1]

    # Zero scratch: its untouched rows/cols supply conv2's zero padding and
    # the never-valid parity positions.  (Re-zeroed every step so it is safe
    # under megacore "parallel" partitioning of the grid.)
    y_scr[...] = jnp.zeros(y_scr.shape, y_scr.dtype)

    # ---- conv1: parity-decomposed intermediate, kept entirely in VMEM ------
    for py in (0, 1):
        for px in (0, 1):
            pp = py * 2 + px
            r0, nr = (1, H1 // 2) if py == 0 else (0, H2)
            c0, nc = (1, W1 // 2) if px == 0 else (0, W2)
            if nr == 0:
                continue
            m = nr * Wq
            acc = jnp.zeros((m, cmid), jnp.float32)
            for dr in range(1 + py):          # shifted-slab matmul accumulation
                for dc in range(1 + px):
                    slab = xq_ref[0, pl.ds((r0 + dr) * Wq + dc, m), :]
                    acc += jnp.dot(slab, w1q_ref[pp, dr * 2 + dc],
                                   preferred_element_type=jnp.float32)
            acc += b1_ref[...]
            # Columns outside the valid range must be exact zeros (they carry
            # the bias / row-wrap halo otherwise).
            col = jax.lax.broadcasted_iota(jnp.int32, (m, 1), 0) % Wq
            acc = jnp.where((col >= c0) & (col < c0 + nc), acc, 0.0)
            y_scr[pp, pl.ds(r0 * Wq, m), :] = acc.astype(y_scr.dtype)

    # ---- conv2: 9 shifted-slab matmul accumulations straight from VMEM -----
    m2 = H2 * Wq
    acc = jnp.zeros((m2, cout), jnp.float32)
    for ky in range(3):
        for kx in range(3):
            pp = (ky % 2) * 2 + (kx % 2)
            off = (ky // 2) * Wq + (kx // 2)
            slab = y_scr[pp, pl.ds(off, m2), :]
            acc += jnp.dot(slab, w2q_ref[ky * 3 + kx],
                           preferred_element_type=jnp.float32)
    acc += b2_ref[...]
    acc = acc.astype(o_ref.dtype)

    # True-Cout output rows: no padded-lane HBM writes, no post-kernel slice.
    for p in range(H2):
        o_ref[0, p] = acc[p * Wq:p * Wq + W2, :]


def _conv_tokenizer_forward(x_nchw, w1q, b1q, w2q, b2q, *, cin, cmid, cout,
                            out_dtype=jnp.float32):
    N, C, H, W = x_nchw.shape
    assert C == cin, (C, cin)
    H1, W1 = (H + 1) // 2, (W + 1) // 2
    H2, W2 = (H1 + 1) // 2, (W1 + 1) // 2
    Hq, Wq = H2 + 2, W2 + 2

    # NCHW -> NHWC, bf16, pad so both convs' pad=1 halos are covered, then
    # pixel-unshuffle by 4 so every in-kernel read is a stride-1 shifted slab.
    xh = jnp.transpose(x_nchw, (0, 2, 3, 1)).astype(jnp.bfloat16)
    xp = jnp.pad(xh, ((0, 0), (3, 4 * Hq - 3 - H), (3, 4 * Wq - 3 - W), (0, 0)))
    xq = xp.reshape(N, Hq, 4, Wq, 4, cin).transpose(0, 1, 3, 2, 4, 5)
    xq = xq.reshape(N, Hq * Wq, 16 * cin)

    kernel = functools.partial(_fused_tokenizer_kernel,
                               H1=H1, W1=W1, H2=H2, W2=W2, Wq=Wq)

    # Crude per-core VMEM footprint estimate (double-buffered blocks, scratch,
    # resident weights, compiler temporaries) to set the scoped-VMEM limit.
    def tile_bytes(shape, dtype):
        s = list(shape)
        s[-1] = _round_up(s[-1], 128)
        if len(s) >= 2:
            s[-2] = _round_up(s[-2], 8)
        return int(np.prod(s)) * np.dtype(dtype).itemsize

    est = (2 * tile_bytes((Hq * Wq, 16 * cin), jnp.bfloat16)
           + 2 * tile_bytes((H2 * W2, cout), out_dtype)
           + tile_bytes((4, (H2 + 2) * Wq, cmid), jnp.bfloat16)
           + tile_bytes((4, 4, 16 * cin, cmid), jnp.bfloat16)
           + tile_bytes((9, cmid, cout), jnp.bfloat16)
           + 4 * tile_bytes((H2 * Wq, max(cmid, cout)), jnp.float32))
    vmem_limit = int(min(max(2 * est, 32 * 2**20), 64 * 2**20))

    return pl.pallas_call(
        kernel,
        out_shape=jax.ShapeDtypeStruct((N, H2, W2, cout), out_dtype),
        grid=(N,),
        in_specs=[
            pl.BlockSpec((1, Hq * Wq, 16 * cin), lambda n: (n, 0, 0)),
            pl.BlockSpec((4, 4, 16 * cin, cmid), lambda n: (0, 0, 0, 0)),
            pl.BlockSpec((1, cmid), lambda n: (0, 0)),
            pl.BlockSpec((9, cmid, cout), lambda n: (0, 0, 0)),
            pl.BlockSpec((1, cout), lambda n: (0, 0)),
        ],
        out_specs=pl.BlockSpec((1, H2, W2, cout), lambda n: (n, 0, 0, 0)),
        scratch_shapes=[pltpu.VMEM((4, (H2 + 2) * Wq, cmid), jnp.bfloat16)],
        compiler_params=pltpu.CompilerParams(
            dimension_semantics=("parallel",),   # batches split across TCs
            vmem_limit_bytes=vmem_limit,
        ),
    )(xq, w1q, b1q, w2q, b2q)


class ConvTokenizerPallas:
    """Pallas equivalent of ConvTokenizer(in_chans, embed_dim, norm_layer=None)."""

    def __init__(self, in_chans=3, embed_dim=96, key=None):
        if key is None:
            key = jax.random.PRNGKey(0)
        k1, k2, k3, k4 = jax.random.split(key, 4)
        mid = embed_dim // 2
        bound1 = 1.0 / (in_chans * 9) ** 0.5
        bound2 = 1.0 / (mid * 9) ** 0.5
        self.in_chans, self.cmid, self.cout = in_chans, mid, embed_dim
        # Raw f32 parameters (PyTorch-Conv2d-style uniform init), kept for ref.
        self.w1 = jax.random.uniform(k1, (mid, in_chans, 3, 3), jnp.float32,
                                     -bound1, bound1)
        self.b1 = jax.random.uniform(k2, (mid,), jnp.float32, -bound1, bound1)
        self.w2 = jax.random.uniform(k3, (embed_dim, mid, 3, 3), jnp.float32,
                                     -bound2, bound2)
        self.b2 = jax.random.uniform(k4, (embed_dim,), jnp.float32,
                                     -bound2, bound2)
        # Packed, MXU-ready layouts (built once; bf16 operands, f32 biases).
        self.w1q = _pack_conv1_weights(self.w1, in_chans, mid)
        self.b1q = jnp.asarray(self.b1, jnp.float32).reshape(1, mid)
        self.w2q = _pack_conv2_weights(self.w2, mid, embed_dim)
        self.b2q = jnp.asarray(self.b2, jnp.float32).reshape(1, embed_dim)
        # norm_layer is None in the reference default; no norm kernel needed.

    def __call__(self, x_nchw, out_dtype=jnp.float32):
        # out_dtype=jnp.bfloat16 halves the output HBM write if the consumer
        # tolerates bf16; default f32 matches the PyTorch reference.
        return _conv_tokenizer_forward(
            x_nchw, self.w1q, self.b1q, self.w2q, self.b2q,
            cin=self.in_chans, cmid=self.cmid, cout=self.cout,
            out_dtype=out_dtype)


def _ref_forward(x_nchw, m):
    """Pure-JAX f32 reference (lax.conv) for correctness checking."""
    def conv(x, w, b):
        y = jax.lax.conv_general_dilated(
            x, w, window_strides=(2, 2), padding=((1, 1), (1, 1)),
            dimension_numbers=("NCHW", "OIHW", "NCHW"))
        return y + b[None, :, None, None]
    y = conv(x_nchw, m.w1, m.b1)
    y = conv(y, m.w2, m.b2)
    return jnp.transpose(y, (0, 2, 3, 1))


if __name__ == "__main__":
    key = jax.random.PRNGKey(0)
    k_in, k_params = jax.random.split(key)

    # Small shapes consistent with the module: NCHW input, in_chans=3,
    # embed_dim=32 -> output (2, 4, 4, 32).
    x = jax.random.normal(k_in, (2, 3, 16, 16), dtype=jnp.float32)

    model = ConvTokenizerPallas(in_chans=3, embed_dim=32, key=k_params)

    fwd = jax.jit(lambda t: model(t))
    out = jax.block_until_ready(fwd(x))

    ref = jax.block_until_ready(_ref_forward(x, model))
    assert out.shape == (2, 4, 4, 32), out.shape
    # Tolerance loosened for bf16 MXU operands (f32 accumulation).
    assert jnp.allclose(out, ref, atol=3e-2, rtol=3e-2), "mismatch vs reference"

    print("KERNEL_OK")
</pallas_src>

<mosaic_0001>
module attributes {stable_mosaic.version = 11 : i64} {
  func.func @_fused_tokenizer_kernel(%arg0: i32, %arg1: memref<1x36x48xbf16, #tpu.memory_space<vmem>>, %arg2: memref<4x4x48x16xbf16, #tpu.memory_space<vmem>>, %arg3: memref<1x16xf32, #tpu.memory_space<vmem>>, %arg4: memref<9x16x32xbf16, #tpu.memory_space<vmem>>, %arg5: memref<1x32xf32, #tpu.memory_space<vmem>>, %arg6: memref<1x4x4x32xf32, #tpu.memory_space<vmem>>, %arg7: memref<4x36x16xbf16, #tpu.memory_space<vmem>>) attributes {dimension_semantics = [#tpu.dimension_semantics<parallel>], iteration_bounds = array<i64: 2>, scalar_prefetch = 0 : i64, scratch_operands = 1 : i64, tpu.core_type = #tpu.core_type<tc>, window_params = [{transform_indices = @transform_0, window_bounds = array<i64: 1, 36, 48>}, {pipeline_mode = #tpu.pipeline_mode<synchronous>, transform_indices = @transform_1, window_bounds = array<i64: 4, 4, 48, 16>}, {pipeline_mode = #tpu.pipeline_mode<synchronous>, transform_indices = @transform_2, window_bounds = array<i64: 1, 16>}, {pipeline_mode = #tpu.pipeline_mode<synchronous>, transform_indices = @transform_3, window_bounds = array<i64: 9, 16, 32>}, {pipeline_mode = #tpu.pipeline_mode<synchronous>, transform_indices = @transform_4, window_bounds = array<i64: 1, 32>}, {transform_indices = @transform_5, window_bounds = array<i64: 1, 4, 4, 32>}]} {
    %cst = arith.constant 0.000000e+00 : bf16
    %0 = vector.broadcast %cst : bf16 to vector<4x36x16xbf16>
    %c0 = arith.constant 0 : index
    %c0_0 = arith.constant 0 : index
    %c0_1 = arith.constant 0 : index
    %1 = vector.load %arg7[%c0, %c0_0, %c0_1] : memref<4x36x16xbf16, #tpu.memory_space<vmem>>, vector<4x36x16xbf16>
    tpu.vector_store %arg7[%c0, %c0_0, %c0_1], %0 {strides = array<i32>} : memref<4x36x16xbf16, #tpu.memory_space<vmem>>, vector<4x36x16xbf16>,
    %cst_2 = arith.constant 0.000000e+00 : f32
    %2 = vector.broadcast %cst_2 : f32 to vector<24x16xf32>
    %c0_3 = arith.constant 0 : index
    %c6 = arith.constant 6 : index
    %c0_4 = arith.constant 0 : index
    %3 = vector.load %arg1[%c0_3, %c6, %c0_4] : memref<1x36x48xbf16, #tpu.memory_space<vmem>>, vector<1x24x48xbf16>
    %4 = vector.shape_cast %3 : vector<1x24x48xbf16> to vector<24x48xbf16>
    %c0_5 = arith.constant 0 : index
    %c0_6 = arith.constant 0 : index
    %c0_7 = arith.constant 0 : index
    %c0_8 = arith.constant 0 : index
    %5 = vector.load %arg2[%c0_5, %c0_6, %c0_7, %c0_8] : memref<4x4x48x16xbf16, #tpu.memory_space<vmem>>, vector<1x1x48x16xbf16>
    %6 = vector.shape_cast %5 : vector<1x1x48x16xbf16> to vector<48x16xbf16>
    %cst_9 = arith.constant dense<0.000000e+00> : vector<24x16xf32>
    %7 = tpu.matmul %4, %6, %cst_9 {dimension_numbers = #tpu.dot_dimension_numbers<[1], [0], [0], [1], [0, 0, 1, 1], [], []>} : vector<24x48xbf16>, vector<48x16xbf16>, vector<24x16xf32> -> vector<24x16xf32>
    %8 = arith.addf %2, %7 : vector<24x16xf32>
    %c0_10 = arith.constant 0 : index
    %c0_11 = arith.constant 0 : index
    %9 = vector.load %arg3[%c0_10, %c0_11] : memref<1x16xf32, #tpu.memory_space<vmem>>, vector<1x16xf32>
    %10 = vector.broadcast %9 : vector<1x16xf32> to vector<24x16xf32>
    %11 = arith.addf %8, %10 : vector<24x16xf32>
    %12 = tpu.iota {dimensions = array<i32: 0>} : vector<24x1xi32>
    %c6_i32 = arith.constant 6 : i32
    %c0_i32 = arith.constant 0 : i32
    %13 = arith.cmpi eq, %c6_i32, %c0_i32 : i32
    %c1_i32 = arith.constant 1 : i32
    %14 = arith.select %13, %c1_i32, %c6_i32 : i32
    %15 = vector.broadcast %14 : i32 to vector<24x1xi32>
    %16 = arith.remsi %12, %15 : vector<24x1xi32>
    %c0_i32_12 = arith.constant 0 : i32
    %17 = vector.broadcast %c0_i32_12 : i32 to vector<24x1xi32>
    %18 = arith.cmpi ne, %16, %17 : vector<24x1xi32>
    %c0_i32_13 = arith.constant 0 : i32
    %19 = vector.broadcast %c0_i32_13 : i32 to vector<24x1xi32>
    %20 = arith.cmpi slt, %16, %19 : vector<24x1xi32>
    %c0_i32_14 = arith.constant 0 : i32
    %21 = arith.cmpi slt, %14, %c0_i32_14 : i32
    %22 = vector.broadcast %21 : i1 to vector<24x1xi1>
    %23 = vector.broadcast %22 : vector<24x1xi1> to vector<24x1xi1>
    %24 = arith.xori %20, %23 : vector<24x1xi1>
    %25 = arith.andi %24, %18 : vector<24x1xi1>
    %26 = vector.broadcast %14 : i32 to vector<24x1xi32>
    %27 = arith.addi %16, %26 : vector<24x1xi32>
    %28 = arith.select %25, %27, %16 : vector<24x1xi1>, vector<24x1xi32>
    %c1_i32_15 = arith.constant 1 : i32
    %29 = vector.broadcast %c1_i32_15 : i32 to vector<24x1xi32>
    %30 = arith.cmpi sge, %28, %29 : vector<24x1xi32>
    %c5_i32 = arith.constant 5 : i32
    %31 = vector.broadcast %c5_i32 : i32 to vector<24x1xi32>
    %32 = arith.cmpi slt, %28, %31 : vector<24x1xi32>
    %33 = arith.andi %30, %32 : vector<24x1xi1>
    %cst_16 = arith.constant 0.000000e+00 : f32
    %34 = vector.shape_cast %33 : vector<24x1xi1> to vector<24x1xi1>
    %35 = vector.broadcast %34 : vector<24x1xi1> to vector<24x16xi1>
    %36 = vector.broadcast %cst_16 : f32 to vector<24x16xf32>
    %37 = arith.select %35, %11, %36 : vector<24x16xi1>, vector<24x16xf32>
    %38 = arith.truncf %37 : vector<24x16xf32> to vector<24x16xbf16>
    %c0_17 = arith.constant 0 : index
    %c6_18 = arith.constant 6 : index
    %c0_19 = arith.constant 0 : index
    %39 = vector.load %arg7[%c0_17, %c6_18, %c0_19] : memref<4x36x16xbf16, #tpu.memory_space<vmem>>, vector<1x24x16xbf16>
    %40 = vector.shape_cast %39 : vector<1x24x16xbf16> to vector<24x16xbf16>
    %41 = vector.shape_cast %38 : vector<24x16xbf16> to vector<1x24x16xbf16>
    tpu.vector_store %arg7[%c0_17, %c6_18, %c0_19], %41 {strides = array<i32>} : memref<4x36x16xbf16, #tpu.memory_space<vmem>>, vector<1x24x16xbf16>,
    %cst_20 = arith.constant 0.000000e+00 : f32
    %42 = vector.broadcast %cst_20 : f32 to vector<24x16xf32>
    %c0_21 = arith.constant 0 : index
    %c6_22 = arith.constant 6 : index
    %c0_23 = arith.constant 0 : index
    %43 = vector.load %arg1[%c0_21, %c6_22, %c0_23] : memref<1x36x48xbf16, #tpu.memory_space<vmem>>, vector<1x24x48xbf16>
    %44 = vector.shape_cast %43 : vector<1x24x48xbf16> to vector<24x48xbf16>
    %c1 = arith.constant 1 : index
    %c0_24 = arith.constant 0 : index
    %c0_25 = arith.constant 0 : index
    %c0_26 = arith.constant 0 : index
    %45 = vector.load %arg2[%c1, %c0_24, %c0_25, %c0_26] : memref<4x4x48x16xbf16, #tpu.memory_space<vmem>>, vector<1x1x48x16xbf16>
    %46 = vector.shape_cast %45 : vector<1x1x48x16xbf16> to vector<48x16xbf16>
    %cst_27 = arith.constant dense<0.000000e+00> : vector<24x16xf32>
    %47 = tpu.matmul %44, %46, %cst_27 {dimension_numbers = #tpu.dot_dimension_numbers<[1], [0], [0], [1], [0, 0, 1, 1], [], []>} : vector<24x48xbf16>, vector<48x16xbf16>, vector<24x16xf32> -> vector<24x16xf32>
    %48 = arith.addf %42, %47 : vector<24x16xf32>
    %c0_28 = arith.constant 0 : index
    %c7 = arith.constant 7 : index
    %c0_29 = arith.constant 0 : index
    %49 = vector.load %arg1[%c0_28, %c7, %c0_29] : memref<1x36x48xbf16, #tpu.memory_space<vmem>>, vector<1x24x48xbf16>
    %50 = vector.shape_cast %49 : vector<1x24x48xbf16> to vector<24x48xbf16>
    %c1_30 = arith.constant 1 : index
    %c1_31 = arith.constant 1 : index
    %c0_32 = arith.constant 0 : index
    %c0_33 = arith.constant 0 : index
    %51 = vector.load %arg2[%c1_30, %c1_31, %c0_32, %c0_33] : memref<4x4x48x16xbf16, #tpu.memory_space<vmem>>, vector<1x1x48x16xbf16>
    %52 = vector.shape_cast %51 : vector<1x1x48x16xbf16> to vector<48x16xbf16>
    %cst_34 = arith.constant dense<0.000000e+00> : vector<24x16xf32>
    %53 = tpu.matmul %50, %52, %cst_34 {dimension_numbers = #tpu.dot_dimension_numbers<[1], [0], [0], [1], [0, 0, 1, 1], [], []>} : vector<24x48xbf16>, vector<48x16xbf16>, vector<24x16xf32> -> vector<24x16xf32>
    %54 = arith.addf %48, %53 : vector<24x16xf32>
    %c0_35 = arith.constant 0 : index
    %c0_36 = arith.constant 0 : index
    %55 = vector.load %arg3[%c0_35, %c0_36] : memref<1x16xf32, #tpu.memory_space<vmem>>, vector<1x16xf32>
    %56 = vector.broadcast %55 : vector<1x16xf32> to vector<24x16xf32>
    %57 = arith.addf %54, %56 : vector<24x16xf32>
    %58 = tpu.iota {dimensions = array<i32: 0>} : vector<24x1xi32>
    %c6_i32_37 = arith.constant 6 : i32
    %c0_i32_38 = arith.constant 0 : i32
    %59 = arith.cmpi eq, %c6_i32_37, %c0_i32_38 : i32
    %c1_i32_39 = arith.constant 1 : i32
    %60 = arith.select %59, %c1_i32_39, %c6_i32_37 : i32
    %61 = vector.broadcast %60 : i32 to vector<24x1xi32>
    %62 = arith.remsi %58, %61 : vector<24x1xi32>
    %c0_i32_40 = arith.constant 0 : i32
    %63 = vector.broadcast %c0_i32_40 : i32 to vector<24x1xi32>
    %64 = arith.cmpi ne, %62, %63 : vector<24x1xi32>
    %c0_i32_41 = arith.constant 0 : i32
    %65 = vector.broadcast %c0_i32_41 : i32 to vector<24x1xi32>
    %66 = arith.cmpi slt, %62, %65 : vector<24x1xi32>
    %c0_i32_42 = arith.constant 0 : i32
    %67 = arith.cmpi slt, %60, %c0_i32_42 : i32
    %68 = vector.broadcast %67 : i1 to vector<24x1xi1>
    %69 = vector.broadcast %68 : vector<24x1xi1> to vector<24x1xi1>
    %70 = arith.xori %66, %69 : vector<24x1xi1>
    %71 = arith.andi %70, %64 : vector<24x1xi1>
    %72 = vector.broadcast %60 : i32 to vector<24x1xi32>
    %73 = arith.addi %62, %72 : vector<24x1xi32>
    %74 = arith.select %71, %73, %62 : vector<24x1xi1>, vector<24x1xi32>
    %c0_i32_43 = arith.constant 0 : i32
    %75 = vector.broadcast %c0_i32_43 : i32 to vector<24x1xi32>
    %76 = arith.cmpi sge, %74, %75 : vector<24x1xi32>
    %c4_i32 = arith.constant 4 : i32
    %77 = vector.broadcast %c4_i32 : i32 to vector<24x1xi32>
    %78 = arith.cmpi slt, %74, %77 : vector<24x1xi32>
    %79 = arith.andi %76, %78 : vector<24x1xi1>
    %cst_44 = arith.constant 0.000000e+00 : f32
    %80 = vector.shape_cast %79 : vector<24x1xi1> to vector<24x1xi1>
    %81 = vector.broadcast %80 : vector<24x1xi1> to vector<24x16xi1>
    %82 = vector.broadcast %cst_44 : f32 to vector<24x16xf32>
    %83 = arith.select %81, %57, %82 : vector<24x16xi1>, vector<24x16xf32>
    %84 = arith.truncf %83 : vector<24x16xf32> to vector<24x16xbf16>
    %c1_45 = arith.constant 1 : index
    %c6_46 = arith.constant 6 : index
    %c0_47 = arith.constant 0 : index
    %85 = vector.load %arg7[%c1_45, %c6_46, %c0_47] : memref<4x36x16xbf16, #tpu.memory_space<vmem>>, vector<1x24x16xbf16>
    %86 = vector.shape_cast %85 : vector<1x24x16xbf16> to vector<24x16xbf16>
    %87 = vector.shape_cast %84 : vector<24x16xbf16> to vector<1x24x16xbf16>
    tpu.vector_store %arg7[%c1_45, %c6_46, %c0_47], %87 {strides = array<i32>} : memref<4x36x16xbf16, #tpu.memory_space<vmem>>, vector<1x24x16xbf16>,
    %cst_48 = arith.constant 0.000000e+00 : f32
    %88 = vector.broadcast %cst_48 : f32 to vector<24x16xf32>
    %c0_49 = arith.constant 0 : index
    %c0_50 = arith.constant 0 : index
    %c0_51 = arith.constant 0 : index
    %89 = vector.load %arg1[%c0_49, %c0_50, %c0_51] : memref<1x36x48xbf16, #tpu.memory_space<vmem>>, vector<1x24x48xbf16>
    %90 = vector.shape_cast %89 : vector<1x24x48xbf16> to vector<24x48xbf16>
    %c2 = arith.constant 2 : index
    %c0_52 = arith.constant 0 : index
    %c0_53 = arith.constant 0 : index
    %c0_54 = arith.constant 0 : index
    %91 = vector.load %arg2[%c2, %c0_52, %c0_53, %c0_54] : memref<4x4x48x16xbf16, #tpu.memory_space<vmem>>, vector<1x1x48x16xbf16>
    %92 = vector.shape_cast %91 : vector<1x1x48x16xbf16> to vector<48x16xbf16>
    %cst_55 = arith.constant dense<0.000000e+00> : vector<24x16xf32>
    %93 = tpu.matmul %90, %92, %cst_55 {dimension_numbers = #tpu.dot_dimension_numbers<[1], [0], [0], [1], [0, 0, 1, 1], [], []>} : vector<24x48xbf16>, vector<48x16xbf16>, vector<24x16xf32> -> vector<24x16xf32>
    %94 = arith.addf %88, %93 : vector<24x16xf32>
    %c0_56 = arith.constant 0 : index
    %c6_57 = arith.constant 6 : index
    %c0_58 = arith.constant 0 : index
    %95 = vector.load %arg1[%c0_56, %c6_57, %c0_58] : memref<1x36x48xbf16, #tpu.memory_space<vmem>>, vector<1x24x48xbf16>
    %96 = vector.shape_cast %95 : vector<1x24x48xbf16> to vector<24x48xbf16>
    %c2_59 = arith.constant 2 : index
    %c2_60 = arith.constant 2 : index
    %c0_61 = arith.constant 0 : index
    %c0_62 = arith.constant 0 : index
    %97 = vector.load %arg2[%c2_59, %c2_60, %c0_61, %c0_62] : memref<4x4x48x16xbf16, #tpu.memory_space<vmem>>, vector<1x1x48x16xbf16>
    %98 = vector.shape_cast %97 : vector<1x1x48x16xbf16> to vector<48x16xbf16>
    %cst_63 = arith.constant dense<0.000000e+00> : vector<24x16xf32>
    %99 = tpu.matmul %96, %98, %cst_63 {dimension_numbers = #tpu.dot_dimension_numbers<[1], [0], [0], [1], [0, 0, 1, 1], [], []>} : vector<24x48xbf16>, vector<48x16xbf16>, vector<24x16xf32> -> vector<24x16xf32>
    %100 = arith.addf %94, %99 : vector<24x16xf32>
    %c0_64 = arith.constant 0 : index
    %c0_65 = arith.constant 0 : index
    %101 = vector.load %arg3[%c0_64, %c0_65] : memref<1x16xf32, #tpu.memory_space<vmem>>, vector<1x16xf32>
    %102 = vector.broadcast %101 : vector<1x16xf32> to vector<24x16xf32>
    %103 = arith.addf %100, %102 : vector<24x16xf32>
    %104 = tpu.iota {dimensions = array<i32: 0>} : vector<24x1xi32>
    %c6_i32_66 = arith.constant 6 : i32
    %c0_i32_67 = arith.constant 0 : i32
    %105 = arith.cmpi eq, %c6_i32_66, %c0_i32_67 : i32
    %c1_i32_68 = arith.constant 1 : i32
    %106 = arith.select %105, %c1_i32_68, %c6_i32_66 : i32
    %107 = vector.broadcast %106 : i32 to vector<24x1xi32>
    %108 = arith.remsi %104, %107 : vector<24x1xi32>
    %c0_i32_69 = arith.constant 0 : i32
    %109 = vector.broadcast %c0_i32_69 : i32 to vector<24x1xi32>
    %110 = arith.cmpi ne, %108, %109 : vector<24x1xi32>
    %c0_i32_70 = arith.constant 0 : i32
    %111 = vector.broadcast %c0_i32_70 : i32 to vector<24x1xi32>
    %112 = arith.cmpi slt, %108, %111 : vector<24x1xi32>
    %c0_i32_71 = arith.constant 0 : i32
    %113 = arith.cmpi slt, %106, %c0_i32_71 : i32
    %114 = vector.broadcast %113 : i1 to vector<24x1xi1>
    %115 = vector.broadcast %114 : vector<24x1xi1> to vector<24x1xi1>
    %116 = arith.xori %112, %115 : vector<24x1xi1>
    %117 = arith.andi %116, %110 : vector<24x1xi1>
    %118 = vector.broadcast %106 : i32 to vector<24x1xi32>
    %119 = arith.addi %108, %118 : vector<24x1xi32>
    %120 = arith.select %117, %119, %108 : vector<24x1xi1>, vector<24x1xi32>
    %c1_i32_72 = arith.constant 1 : i32
    %121 = vector.broadcast %c1_i32_72 : i32 to vector<24x1xi32>
    %122 = arith.cmpi sge, %120, %121 : vector<24x1xi32>
    %c5_i32_73 = arith.constant 5 : i32
    %123 = vector.broadcast %c5_i32_73 : i32 to vector<24x1xi32>
    %124 = arith.cmpi slt, %120, %123 : vector<24x1xi32>
    %125 = arith.andi %122, %124 : vector<24x1xi1>
    %cst_74 = arith.constant 0.000000e+00 : f32
    %126 = vector.shape_cast %125 : vector<24x1xi1> to vector<24x1xi1>
    %127 = vector.broadcast %126 : vector<24x1xi1> to vector<24x16xi1>
    %128 = vector.broadcast %cst_74 : f32 to vector<24x16xf32>
    %129 = arith.select %127, %103, %128 : vector<24x16xi1>, vector<24x16xf32>
    %130 = arith.truncf %129 : vector<24x16xf32> to vector<24x16xbf16>
    %c2_75 = arith.constant 2 : index
    %c0_76 = arith.constant 0 : index
    %c0_77 = arith.constant 0 : index
    %131 = vector.load %arg7[%c2_75, %c0_76, %c0_77] : memref<4x36x16xbf16, #tpu.memory_space<vmem>>, vector<1x24x16xbf16>
    %132 = vector.shape_cast %131 : vector<1x24x16xbf16> to vector<24x16xbf16>
    %133 = vector.shape_cast %130 : vector<24x16xbf16> to vector<1x24x16xbf16>
    tpu.vector_store %arg7[%c2_75, %c0_76, %c0_77], %133 {strides = array<i32>} : memref<4x36x16xbf16, #tpu.memory_space<vmem>>, vector<1x24x16xbf16>,
    %cst_78 = arith.constant 0.000000e+00 : f32
    %134 = vector.broadcast %cst_78 : f32 to vector<24x16xf32>
    %c0_79 = arith.constant 0 : index
    %c0_80 = arith.constant 0 : index
    %c0_81 = arith.constant 0 : index
    %135 = vector.load %arg1[%c0_79, %c0_80, %c0_81] : memref<1x36x48xbf16, #tpu.memory_space<vmem>>, vector<1x24x48xbf16>
    %136 = vector.shape_cast %135 : vector<1x24x48xbf16> to vector<24x48xbf16>
    %c3 = arith.constant 3 : index
    %c0_82 = arith.constant 0 : index
    %c0_83 = arith.constant 0 : index
    %c0_84 = arith.constant 0 : index
    %137 = vector.load %arg2[%c3, %c0_82, %c0_83, %c0_84] : memref<4x4x48x16xbf16, #tpu.memory_space<vmem>>, vector<1x1x48x16xbf16>
    %138 = vector.shape_cast %137 : vector<1x1x48x16xbf16> to vector<48x16xbf16>
    %cst_85 = arith.constant dense<0.000000e+00> : vector<24x16xf32>
    %139 = tpu.matmul %136, %138, %cst_85 {dimension_numbers = #tpu.dot_dimension_numbers<[1], [0], [0], [1], [0, 0, 1, 1], [], []>} : vector<24x48xbf16>, vector<48x16xbf16>, vector<24x16xf32> -> vector<24x16xf32>
    %140 = arith.addf %134, %139 : vector<24x16xf32>
    %c0_86 = arith.constant 0 : index
    %c1_87 = arith.constant 1 : index
    %c0_88 = arith.constant 0 : index
    %141 = vector.load %arg1[%c0_86, %c1_87, %c0_88] : memref<1x36x48xbf16, #tpu.memory_space<vmem>>, vector<1x24x48xbf16>
    %142 = vector.shape_cast %141 : vector<1x24x48xbf16> to vector<24x48xbf16>
    %c3_89 = arith.constant 3 : index
    %c1_90 = arith.constant 1 : index
    %c0_91 = arith.constant 0 : index
    %c0_92 = arith.constant 0 : index
    %143 = vector.load %arg2[%c3_89, %c1_90, %c0_91, %c0_92] : memref<4x4x48x16xbf16, #tpu.memory_space<vmem>>, vector<1x1x48x16xbf16>
    %144 = vector.shape_cast %143 : vector<1x1x48x16xbf16> to vector<48x16xbf16>
    %cst_93 = arith.constant dense<0.000000e+00> : vector<24x16xf32>
    %145 = tpu.matmul %142, %144, %cst_93 {dimension_numbers = #tpu.dot_dimension_numbers<[1], [0], [0], [1], [0, 0, 1, 1], [], []>} : vector<24x48xbf16>, vector<48x16xbf16>, vector<24x16xf32> -> vector<24x16xf32>
    %146 = arith.addf %140, %145 : vector<24x16xf32>
    %c0_94 = arith.constant 0 : index
    %c6_95 = arith.constant 6 : index
    %c0_96 = arith.constant 0 : index
    %147 = vector.load %arg1[%c0_94, %c6_95, %c0_96] : memref<1x36x48xbf16, #tpu.memory_space<vmem>>, vector<1x24x48xbf16>
    %148 = vector.shape_cast %147 : vector<1x24x48xbf16> to vector<24x48xbf16>
    %c3_97 = arith.constant 3 : index
    %c2_98 = arith.constant 2 : index
    %c0_99 = arith.constant 0 : index
    %c0_100 = arith.constant 0 : index
    %149 = vector.load %arg2[%c3_97, %c2_98, %c0_99, %c0_100] : memref<4x4x48x16xbf16, #tpu.memory_space<vmem>>, vector<1x1x48x16xbf16>
    %150 = vector.shape_cast %149 : vector<1x1x48x16xbf16> to vector<48x16xbf16>
    %cst_101 = arith.constant dense<0.000000e+00> : vector<24x16xf32>
    %151 = tpu.matmul %148, %150, %cst_101 {dimension_numbers = #tpu.dot_dimension_numbers<[1], [0], [0], [1], [0, 0, 1, 1], [], []>} : vector<24x48xbf16>, vector<48x16xbf16>, vector<24x16xf32> -> vector<24x16xf32>
    %152 = arith.addf %146, %151 : vector<24x16xf32>
    %c0_102 = arith.constant 0 : index
    %c7_103 = arith.constant 7 : index
    %c0_104 = arith.constant 0 : index
    %153 = vector.load %arg1[%c0_102, %c7_103, %c0_104] : memref<1x36x48xbf16, #tpu.memory_space<vmem>>, vector<1x24x48xbf16>
    %154 = vector.shape_cast %153 : vector<1x24x48xbf16> to vector<24x48xbf16>
    %c3_105 = arith.constant 3 : index
    %c3_106 = arith.constant 3 : index
    %c0_107 = arith.constant 0 : index
    %c0_108 = arith.constant 0 : index
    %155 = vector.load %arg2[%c3_105, %c3_106, %c0_107, %c0_108] : memref<4x4x48x16xbf16, #tpu.memory_space<vmem>>, vector<1x1x48x16xbf16>
    %156 = vector.shape_cast %155 : vector<1x1x48x16xbf16> to vector<48x16xbf16>
    %cst_109 = arith.constant dense<0.000000e+00> : vector<24x16xf32>
    %157 = tpu.matmul %154, %156, %cst_109 {dimension_numbers = #tpu.dot_dimension_numbers<[1], [0], [0], [1], [0, 0, 1, 1], [], []>} : vector<24x48xbf16>, vector<48x16xbf16>, vector<24x16xf32> -> vector<24x16xf32>
    %158 = arith.addf %152, %157 : vector<24x16xf32>
    %c0_110 = arith.constant 0 : index
    %c0_111 = arith.constant 0 : index
    %159 = vector.load %arg3[%c0_110, %c0_111] : memref<1x16xf32, #tpu.memory_space<vmem>>, vector<1x16xf32>
    %160 = vector.broadcast %159 : vector<1x16xf32> to vector<24x16xf32>
    %161 = arith.addf %158, %160 : vector<24x16xf32>
    %162 = tpu.iota {dimensions = array<i32: 0>} : vector<24x1xi32>
    %c6_i32_112 = arith.constant 6 : i32
    %c0_i32_113 = arith.constant 0 : i32
    %163 = arith.cmpi eq, %c6_i32_112, %c0_i32_113 : i32
    %c1_i32_114 = arith.constant 1 : i32
    %164 = arith.select %163, %c1_i32_114, %c6_i32_112 : i32
    %165 = vector.broadcast %164 : i32 to vector<24x1xi32>
    %166 = arith.remsi %162, %165 : vector<24x1xi32>
    %c0_i32_115 = arith.constant 0 : i32
    %167 = vector.broadcast %c0_i32_115 : i32 to vector<24x1xi32>
    %168 = arith.cmpi ne, %166, %167 : vector<24x1xi32>
    %c0_i32_116 = arith.constant 0 : i32
    %169 = vector.broadcast %c0_i32_116 : i32 to vector<24x1xi32>
    %170 = arith.cmpi slt, %166, %169 : vector<24x1xi32>
    %c0_i32_117 = arith.constant 0 : i32
    %171 = arith.cmpi slt, %164, %c0_i32_117 : i32
    %172 = vector.broadcast %171 : i1 to vector<24x1xi1>
    %173 = vector.broadcast %172 : vector<24x1xi1> to vector<24x1xi1>
    %174 = arith.xori %170, %173 : vector<24x1xi1>
    %175 = arith.andi %174, %168 : vector<24x1xi1>
    %176 = vector.broadcast %164 : i32 to vector<24x1xi32>
    %177 = arith.addi %166, %176 : vector<24x1xi32>
    %178 = arith.select %175, %177, %166 : vector<24x1xi1>, vector<24x1xi32>
    %c0_i32_118 = arith.constant 0 : i32
    %179 = vector.broadcast %c0_i32_118 : i32 to vector<24x1xi32>
    %180 = arith.cmpi sge, %178, %179 : vector<24x1xi32>
    %c4_i32_119 = arith.constant 4 : i32
    %181 = vector.broadcast %c4_i32_119 : i32 to vector<24x1xi32>
    %182 = arith.cmpi slt, %178, %181 : vector<24x1xi32>
    %183 = arith.andi %180, %182 : vector<24x1xi1>
    %cst_120 = arith.constant 0.000000e+00 : f32
    %184 = vector.shape_cast %183 : vector<24x1xi1> to vector<24x1xi1>
    %185 = vector.broadcast %184 : vector<24x1xi1> to vector<24x16xi1>
    %186 = vector.broadcast %cst_120 : f32 to vector<24x16xf32>
    %187 = arith.select %185, %161, %186 : vector<24x16xi1>, vector<24x16xf32>
    %188 = arith.truncf %187 : vector<24x16xf32> to vector<24x16xbf16>
    %c3_121 = arith.constant 3 : index
    %c0_122 = arith.constant 0 : index
    %c0_123 = arith.constant 0 : index
    %189 = vector.load %arg7[%c3_121, %c0_122, %c0_123] : memref<4x36x16xbf16, #tpu.memory_space<vmem>>, vector<1x24x16xbf16>
    %190 = vector.shape_cast %189 : vector<1x24x16xbf16> to vector<24x16xbf16>
    %191 = vector.shape_cast %188 : vector<24x16xbf16> to vector<1x24x16xbf16>
    tpu.vector_store %arg7[%c3_121, %c0_122, %c0_123], %191 {strides = array<i32>} : memref<4x36x16xbf16, #tpu.memory_space<vmem>>, vector<1x24x16xbf16>,
    %cst_124 = arith.constant 0.000000e+00 : f32
    %192 = vector.broadcast %cst_124 : f32 to vector<24x32xf32>
    %c0_125 = arith.constant 0 : index
    %c0_126 = arith.constant 0 : index
    %c0_127 = arith.constant 0 : index
    %193 = vector.load %arg7[%c0_125, %c0_126, %c0_127] : memref<4x36x16xbf16, #tpu.memory_space<vmem>>, vector<1x24x16xbf16>
    %194 = vector.shape_cast %193 : vector<1x24x16xbf16> to vector<24x16xbf16>
    %c0_128 = arith.constant 0 : index
    %c0_129 = arith.constant 0 : index
    %c0_130 = arith.constant 0 : index
    %195 = vector.load %arg4[%c0_128, %c0_129, %c0_130] : memref<9x16x32xbf16, #tpu.memory_space<vmem>>, vector<1x16x32xbf16>
    %196 = vector.shape_cast %195 : vector<1x16x32xbf16> to vector<16x32xbf16>
    %cst_131 = arith.constant dense<0.000000e+00> : vector<24x32xf32>
    %197 = tpu.matmul %194, %196, %cst_131 {dimension_numbers = #tpu.dot_dimension_numbers<[1], [0], [0], [1], [0, 0, 1, 1], [], []>} : vector<24x16xbf16>, vector<16x32xbf16>, vector<24x32xf32> -> vector<24x32xf32>
    %198 = arith.addf %192, %197 : vector<24x32xf32>
    %c1_132 = arith.constant 1 : index
    %c0_133 = arith.constant 0 : index
    %c0_134 = arith.constant 0 : index
    %199 = vector.load %arg7[%c1_132, %c0_133, %c0_134] : memref<4x36x16xbf16, #tpu.memory_space<vmem>>, vector<1x24x16xbf16>
    %200 = vector.shape_cast %199 : vector<1x24x16xbf16> to vector<24x16xbf16>
    %c1_135 = arith.constant 1 : index
    %c0_136 = arith.constant 0 : index
    %c0_137 = arith.constant 0 : index
    %201 = vector.load %arg4[%c1_135, %c0_136, %c0_137] : memref<9x16x32xbf16, #tpu.memory_space<vmem>>, vector<1x16x32xbf16>
    %202 = vector.shape_cast %201 : vector<1x16x32xbf16> to vector<16x32xbf16>
    %cst_138 = arith.constant dense<0.000000e+00> : vector<24x32xf32>
    %203 = tpu.matmul %200, %202, %cst_138 {dimension_numbers = #tpu.dot_dimension_numbers<[1], [0], [0], [1], [0, 0, 1, 1], [], []>} : vector<24x16xbf16>, vector<16x32xbf16>, vector<24x32xf32> -> vector<24x32xf32>
    %204 = arith.addf %198, %203 : vector<24x32xf32>
    %c0_139 = arith.constant 0 : index
    %c1_140 = arith.constant 1 : index
    %c0_141 = arith.constant 0 : index
    %205 = vector.load %arg7[%c0_139, %c1_140, %c0_141] : memref<4x36x16xbf16, #tpu.memory_space<vmem>>, vector<1x24x16xbf16>
    %206 = vector.shape_cast %205 : vector<1x24x16xbf16> to vector<24x16xbf16>
    %c2_142 = arith.constant 2 : index
    %c0_143 = arith.constant 0 : index
    %c0_144 = arith.constant 0 : index
    %207 = vector.load %arg4[%c2_142, %c0_143, %c0_144] : memref<9x16x32xbf16, #tpu.memory_space<vmem>>, vector<1x16x32xbf16>
    %208 = vector.shape_cast %207 : vector<1x16x32xbf16> to vector<16x32xbf16>
    %cst_145 = arith.constant dense<0.000000e+00> : vector<24x32xf32>
    %209 = tpu.matmul %206, %208, %cst_145 {dimension_numbers = #tpu.dot_dimension_numbers<[1], [0], [0], [1], [0, 0, 1, 1], [], []>} : vector<24x16xbf16>, vector<16x32xbf16>, vector<24x32xf32> -> vector<24x32xf32>
    %210 = arith.addf %204, %209 : vector<24x32xf32>
    %c2_146 = arith.constant 2 : index
    %c0_147 = arith.constant 0 : index
    %c0_148 = arith.constant 0 : index
    %211 = vector.load %arg7[%c2_146, %c0_147, %c0_148] : memref<4x36x16xbf16, #tpu.memory_space<vmem>>, vector<1x24x16xbf16>
    %212 = vector.shape_cast %211 : vector<1x24x16xbf16> to vector<24x16xbf16>
    %c3_149 = arith.constant 3 : index
    %c0_150 = arith.constant 0 : index
    %c0_151 = arith.constant 0 : index
    %213 = vector.load %arg4[%c3_149, %c0_150, %c0_151] : memref<9x16x32xbf16, #tpu.memory_space<vmem>>, vector<1x16x32xbf16>
    %214 = vector.shape_cast %213 : vector<1x16x32xbf16> to vector<16x32xbf16>
    %cst_152 = arith.constant dense<0.000000e+00> : vector<24x32xf32>
    %215 = tpu.matmul %212, %214, %cst_152 {dimension_numbers = #tpu.dot_dimension_numbers<[1], [0], [0], [1], [0, 0, 1, 1], [], []>} : vector<24x16xbf16>, vector<16x32xbf16>, vector<24x32xf32> -> vector<24x32xf32>
    %216 = arith.addf %210, %215 : vector<24x32xf32>
    %c3_153 = arith.constant 3 : index
    %c0_154 = arith.constant 0 : index
    %c0_155 = arith.constant 0 : index
    %217 = vector.load %arg7[%c3_153, %c0_154, %c0_155] : memref<4x36x16xbf16, #tpu.memory_space<vmem>>, vector<1x24x16xbf16>
    %218 = vector.shape_cast %217 : vector<1x24x16xbf16> to vector<24x16xbf16>
    %c4 = arith.constant 4 : index
    %c0_156 = arith.constant 0 : index
    %c0_157 = arith.constant 0 : index
    %219 = vector.load %arg4[%c4, %c0_156, %c0_157] : memref<9x16x32xbf16, #tpu.memory_space<vmem>>, vector<1x16x32xbf16>
    %220 = vector.shape_cast %219 : vector<1x16x32xbf16> to vector<16x32xbf16>
    %cst_158 = arith.constant dense<0.000000e+00> : vector<24x32xf32>
    %221 = tpu.matmul %218, %220, %cst_158 {dimension_numbers = #tpu.dot_dimension_numbers<[1], [0], [0], [1], [0, 0, 1, 1], [], []>} : vector<24x16xbf16>, vector<16x32xbf16>, vector<24x32xf32> -> vector<24x32xf32>
    %222 = arith.addf %216, %221 : vector<24x32xf32>
    %c2_159 = arith.constant 2 : index
    %c1_160 = arith.constant 1 : index
    %c0_161 = arith.constant 0 : index
    %223 = vector.load %arg7[%c2_159, %c1_160, %c0_161] : memref<4x36x16xbf16, #tpu.memory_space<vmem>>, vector<1x24x16xbf16>
    %224 = vector.shape_cast %223 : vector<1x24x16xbf16> to vector<24x16xbf16>
    %c5 = arith.constant 5 : index
    %c0_162 = arith.constant 0 : index
    %c0_163 = arith.constant 0 : index
    %225 = vector.load %arg4[%c5, %c0_162, %c0_163] : memref<9x16x32xbf16, #tpu.memory_space<vmem>>, vector<1x16x32xbf16>
    %226 = vector.shape_cast %225 : vector<1x16x32xbf16> to vector<16x32xbf16>
    %cst_164 = arith.constant dense<0.000000e+00> : vector<24x32xf32>
    %227 = tpu.matmul %224, %226, %cst_164 {dimension_numbers = #tpu.dot_dimension_numbers<[1], [0], [0], [1], [0, 0, 1, 1], [], []>} : vector<24x16xbf16>, vector<16x32xbf16>, vector<24x32xf32> -> vector<24x32xf32>
    %228 = arith.addf %222, %227 : vector<24x32xf32>
    %c0_165 = arith.constant 0 : index
    %c6_166 = arith.constant 6 : index
    %c0_167 = arith.constant 0 : index
    %229 = vector.load %arg7[%c0_165, %c6_166, %c0_167] : memref<4x36x16xbf16, #tpu.memory_space<vmem>>, vector<1x24x16xbf16>
    %230 = vector.shape_cast %229 : vector<1x24x16xbf16> to vector<24x16xbf16>
    %c6_168 = arith.constant 6 : index
    %c0_169 = arith.constant 0 : index
    %c0_170 = arith.constant 0 : index
    %231 = vector.load %arg4[%c6_168, %c0_169, %c0_170] : memref<9x16x32xbf16, #tpu.memory_space<vmem>>, vector<1x16x32xbf16>
    %232 = vector.shape_cast %231 : vector<1x16x32xbf16> to vector<16x32xbf16>
    %cst_171 = arith.constant dense<0.000000e+00> : vector<24x32xf32>
    %233 = tpu.matmul %230, %232, %cst_171 {dimension_numbers = #tpu.dot_dimension_numbers<[1], [0], [0], [1], [0, 0, 1, 1], [], []>} : vector<24x16xbf16>, vector<16x32xbf16>, vector<24x32xf32> -> vector<24x32xf32>
    %234 = arith.addf %228, %233 : vector<24x32xf32>
    %c1_172 = arith.constant 1 : index
    %c6_173 = arith.constant 6 : index
    %c0_174 = arith.constant 0 : index
    %235 = vector.load %arg7[%c1_172, %c6_173, %c0_174] : memref<4x36x16xbf16, #tpu.memory_space<vmem>>, vector<1x24x16xbf16>
    %236 = vector.shape_cast %235 : vector<1x24x16xbf16> to vector<24x16xbf16>
    %c7_175 = arith.constant 7 : index
    %c0_176 = arith.constant 0 : index
    %c0_177 = arith.constant 0 : index
    %237 = vector.load %arg4[%c7_175, %c0_176, %c0_177] : memref<9x16x32xbf16, #tpu.memory_space<vmem>>, vector<1x16x32xbf16>
    %238 = vector.shape_cast %237 : vector<1x16x32xbf16> to vector<16x32xbf16>
    %cst_178 = arith.constant dense<0.000000e+00> : vector<24x32xf32>
    %239 = tpu.matmul %236, %238, %cst_178 {dimension_numbers = #tpu.dot_dimension_numbers<[1], [0], [0], [1], [0, 0, 1, 1], [], []>} : vector<24x16xbf16>, vector<16x32xbf16>, vector<24x32xf32> -> vector<24x32xf32>
    %240 = arith.addf %234, %239 : vector<24x32xf32>
    %c0_179 = arith.constant 0 : index
    %c7_180 = arith.constant 7 : index
    %c0_181 = arith.constant 0 : index
    %241 = vector.load %arg7[%c0_179, %c7_180, %c0_181] : memref<4x36x16xbf16, #tpu.memory_space<vmem>>, vector<1x24x16xbf16>
    %242 = vector.shape_cast %241 : vector<1x24x16xbf16> to vector<24x16xbf16>
    %c8 = arith.constant 8 : index
    %c0_182 = arith.constant 0 : index
    %c0_183 = arith.constant 0 : index
    %243 = vector.load %arg4[%c8, %c0_182, %c0_183] : memref<9x16x32xbf16, #tpu.memory_space<vmem>>, vector<1x16x32xbf16>
    %244 = vector.shape_cast %243 : vector<1x16x32xbf16> to vector<16x32xbf16>
    %cst_184 = arith.constant dense<0.000000e+00> : vector<24x32xf32>
    %245 = tpu.matmul %242, %244, %cst_184 {dimension_numbers = #tpu.dot_dimension_numbers<[1], [0], [0], [1], [0, 0, 1, 1], [], []>} : vector<24x16xbf16>, vector<16x32xbf16>, vector<24x32xf32> -> vector<24x32xf32>
    %246 = arith.addf %240, %245 : vector<24x32xf32>
    %c0_185 = arith.constant 0 : index
    %c0_186 = arith.constant 0 : index
    %247 = vector.load %arg5[%c0_185, %c0_186] : memref<1x32xf32, #tpu.memory_space<vmem>>, vector<1x32xf32>
    %248 = vector.broadcast %247 : vector<1x32xf32> to vector<24x32xf32>
    %249 = arith.addf %246, %248 : vector<24x32xf32>
    %250 = vector.extract_strided_slice %249 {offsets = [0, 0], sizes = [4, 32], strides = [1, 1]} : vector<24x32xf32> to vector<4x32xf32>
    %c0_187 = arith.constant 0 : index
    %c0_188 = arith.constant 0 : index
    %c0_189 = arith.constant 0 : index
    %c0_190 = arith.constant 0 : index
    %251 = vector.load %arg6[%c0_187, %c0_188, %c0_189, %c0_190] : memref<1x4x4x32xf32, #tpu.memory_space<vmem>>, vector<1x1x4x32xf32>
    %252 = vector.shape_cast %251 : vector<1x1x4x32xf32> to vector<4x32xf32>
    %253 = vector.shape_cast %250 : vector<4x32xf32> to vector<1x1x4x32xf32>
    tpu.vector_store %arg6[%c0_187, %c0_188, %c0_189, %c0_190], %253 {strides = array<i32>} : memref<1x4x4x32xf32, #tpu.memory_space<vmem>>, vector<1x1x4x32xf32>,
    %254 = vector.extract_strided_slice %249 {offsets = [6, 0], sizes = [4, 32], strides = [1, 1]} : vector<24x32xf32> to vector<4x32xf32>
    %c0_191 = arith.constant 0 : index
    %c1_192 = arith.constant 1 : index
    %c0_193 = arith.constant 0 : index
    %c0_194 = arith.constant 0 : index
    %255 = vector.load %arg6[%c0_191, %c1_192, %c0_193, %c0_194] : memref<1x4x4x32xf32, #tpu.memory_space<vmem>>, vector<1x1x4x32xf32>
    %256 = vector.shape_cast %255 : vector<1x1x4x32xf32> to vector<4x32xf32>
    %257 = vector.shape_cast %254 : vector<4x32xf32> to vector<1x1x4x32xf32>
    tpu.vector_store %arg6[%c0_191, %c1_192, %c0_193, %c0_194], %257 {strides = array<i32>} : memref<1x4x4x32xf32, #tpu.memory_space<vmem>>, vector<1x1x4x32xf32>,
    %258 = vector.extract_strided_slice %249 {offsets = [12, 0], sizes = [4, 32], strides = [1, 1]} : vector<24x32xf32> to vector<4x32xf32>
    %c0_195 = arith.constant 0 : index
    %c2_196 = arith.constant 2 : index
    %c0_197 = arith.constant 0 : index
    %c0_198 = arith.constant 0 : index
    %259 = vector.load %arg6[%c0_195, %c2_196, %c0_197, %c0_198] : memref<1x4x4x32xf32, #tpu.memory_space<vmem>>, vector<1x1x4x32xf32>
    %260 = vector.shape_cast %259 : vector<1x1x4x32xf32> to vector<4x32xf32>
    %261 = vector.shape_cast %258 : vector<4x32xf32> to vector<1x1x4x32xf32>
    tpu.vector_store %arg6[%c0_195, %c2_196, %c0_197, %c0_198], %261 {strides = array<i32>} : memref<1x4x4x32xf32, #tpu.memory_space<vmem>>, vector<1x1x4x32xf32>,
    %262 = vector.extract_strided_slice %249 {offsets = [18, 0], sizes = [4, 32], strides = [1, 1]} : vector<24x32xf32> to vector<4x32xf32>
    %c0_199 = arith.constant 0 : index
    %c3_200 = arith.constant 3 : index
    %c0_201 = arith.constant 0 : index
    %c0_202 = arith.constant 0 : index
    %263 = vector.load %arg6[%c0_199, %c3_200, %c0_201, %c0_202] : memref<1x4x4x32xf32, #tpu.memory_space<vmem>>, vector<1x1x4x32xf32>
    %264 = vector.shape_cast %263 : vector<1x1x4x32xf32> to vector<4x32xf32>
    %265 = vector.shape_cast %262 : vector<4x32xf32> to vector<1x1x4x32xf32>
    tpu.vector_store %arg6[%c0_199, %c3_200, %c0_201, %c0_202], %265 {strides = array<i32>} : memref<1x4x4x32xf32, #tpu.memory_space<vmem>>, vector<1x1x4x32xf32>,
    return
  }
  func.func @transform_0(%arg0: i32) -> (i32, i32, i32) {
    %c0_i32 = arith.constant 0 : i32
    %c0_i32_0 = arith.constant 0 : i32
    %c0_i32_1 = arith.constant 0 : i32
    return %arg0, %c0_i32, %c0_i32_0 : i32, i32, i32
  }
  func.func @transform_1(%arg0: i32) -> (i32, i32, i32, i32) {
    %c0_i32 = arith.constant 0 : i32
    %c0_i32_0 = arith.constant 0 : i32
    %c0_i32_1 = arith.constant 0 : i32
    %c0_i32_2 = arith.constant 0 : i32
    %c0_i32_3 = arith.constant 0 : i32
    return %c0_i32, %c0_i32_0, %c0_i32_1, %c0_i32_2 : i32, i32, i32, i32
  }
  func.func @transform_2(%arg0: i32) -> (i32, i32) {
    %c0_i32 = arith.constant 0 : i32
    %c0_i32_0 = arith.constant 0 : i32
    %c0_i32_1 = arith.constant 0 : i32
    return %c0_i32, %c0_i32_0 : i32, i32
  }
  func.func @transform_3(%arg0: i32) -> (i32, i32, i32) {
    %c0_i32 = arith.constant 0 : i32
    %c0_i32_0 = arith.constant 0 : i32
    %c0_i32_1 = arith.constant 0 : i32
    %c0_i32_2 = arith.constant 0 : i32
    return %c0_i32, %c0_i32_0, %c0_i32_1 : i32, i32, i32
  }
  func.func @transform_4(%arg0: i32) -> (i32, i32) {
    %c0_i32 = arith.constant 0 : i32
    %c0_i32_0 = arith.constant 0 : i32
    %c0_i32_1 = arith.constant 0 : i32
    return %c0_i32, %c0_i32_0 : i32, i32
  }
  func.func @transform_5(%arg0: i32) -> (i32, i32, i32, i32) {
    %c0_i32 = arith.constant 0 : i32
    %c0_i32_0 = arith.constant 0 : i32
    %c0_i32_1 = arith.constant 0 : i32
    %c0_i32_2 = arith.constant 0 : i32
    return %arg0, %c0_i32, %c0_i32_0, %c0_i32_1 : i32, i32, i32, i32
  }
}

</mosaic_0001>

<llo_original>
// kernel: _lambda_.1
$region0: #{_lambda_.1}
  #allocation0 [shape = 'u32[]', space=smem, size = 0x4, offset = 0x4, fixed_abs, tag = 'smem constant byte address 0x4 - core index']
  #allocation1 [shape = 'u32[144,128]{1,0:T(1,128)}', space=vmem, size = 0x12000, scoped, tag = 'internal scratch']
  #allocation2 [shape = 'bf16[4,36,16]{2,1,0:T(8,128)(2,1)}', space=vmem, size = 0xa000, scoped, tag = 'scratch operand']
  %s0 = inlined_call_operand.vmem [shape: bf16[2,36,48], index: 0, kind: input, shape index: {}]
  %s1 = inlined_call_operand.vmem [shape: bf16[4,4,48,16], index: 1, kind: input, shape index: {}]
  %s2 = inlined_call_operand.vmem [shape: f32[1,16], index: 2, kind: input, shape index: {}]
  %s3 = inlined_call_operand.vmem [shape: bf16[9,16,32], index: 3, kind: input, shape index: {}]
  %s4 = inlined_call_operand.vmem [shape: f32[1,32], index: 4, kind: input, shape index: {}]
  %s5 = inlined_call_operand.hbm [shape: f32[2,4,4,32], index: 5, kind: output, shape index: {}]
  %s6 = sld [smem:[#allocation0]]
  $region53: #{_lambda_.1} parent=0
    _
  %s8 = ssub.s32 1, %s6
  %s9 = scalar_select 0, %s8, %s6
  $region1: #{_lambda_.1} parent=0
    #allocation3 [shape = 'u8[16384]{0}', space=vmem, size = 0x4000, scoped, tag = 'output window, operand 0']
    #allocation4 [shape = 's32[2]{0}', space=sflag, size = 0x8, scoped, tag = 'scoped memory for _lambda_.1']
    %10 = vsyncpa [#allocation4], 0
    %s11 = scalar_lea.sflag [#allocation4], 1
    %12 = vsyncpa %s11, 0
    loop: start=0, step=1, limit=4
    $region2: #{_lambda_.1} parent=1 // loop_pre_header
      _
    $region3: #{_lambda_.1} parent=1 // loop_header
      %s14 = sphi 0, %s18
      %p15 = scmp.ge.s32.totalorder %s14, 4
      %s24 = sphi 0, %s26
      %s27 = sphi 0, %s24
      %s28 = sphi 0, %s27
      %s44 = sphi 0, %s28
      %s48 = sphi 0, %s48
      %s50 = sphi 0, %s48
      %s51 = sphi 0, %s50
      %s65 = sphi 0, %s51
      %s69 = sphi 0, %s69
      %s71 = sphi 0, %s69
      %s72 = sphi 0, %s71
      %s86 = sphi 0, %s72
      %s90 = sphi 0, %s90
      %s92 = sphi 0, %s90
      %s93 = sphi 0, %s92
      %s107 = sphi 0, %s93
      %s111 = sphi 0, %s111
      %s113 = sphi 0, %s111
      %s114 = sphi 0, %s113
      %s128 = sphi 0, %s114
      %s134 = sphi 0, %s136
      %s137 = sphi 0, %s134
      %s138 = sphi 0, %s137
      %s154 = sphi 0, %s138
    $region4: #{_lambda_.1} parent=1 // loop_header_branch
      %17 = sbr.rel (%p15) target = $region8
    $region5: #{_lambda_.1} parent=1 // loop_body
      %s19 = ssub.s32 %s14, 1
      %s20 = ssub.s32 %s14, 2
      %s21 = sadd.s32 %s14, 1
      %s22 = ssub.s32 %s14, %s21
      %p23 = scmp.eq.s32.totalorder %s22, 0
      %s25 = sadd.s32 %s24, 1
      %s26 = scalar_select %p23, %s24, %s25
      %p29 = pneg %p23
      %p30 = scmp.eq.s32.totalorder %s14, 1
      %p31 = por %p29, %p30
      %p32 = scmp.ne.s32.totalorder %s24, %s27
      %p33 = scmp.eq.s32.totalorder %s14, 0
      %p34 = por %p32, %p33
      %p35 = scmp.ne.s32.totalorder %s24, %s27
      %p36 = scmp.eq.s32.totalorder %s19, 1
      %p37 = por %p35, %p36
      %p38 = scmp.ne.s32.totalorder %s27, %s28
      %p39 = scmp.eq.s32.totalorder %s19, 0
      %p40 = por %p38, %p39
      %p41 = scmp.ne.s32.totalorder %s27, %s28
      %p42 = scmp.eq.s32.totalorder %s20, 1
      %p43 = por %p41, %p42
      %p45 = scmp.ne.s32.totalorder %s28, %s44
      %p46 = scmp.eq.s32.totalorder %s20, 0
      %p47 = por %p45, %p46
      %s49 = sadd.s32 %s48, 1
      %p52 = scmp.eq.s32.totalorder %s14, 1
      %p53 = scmp.ne.s32.totalorder %s48, %s50
      %p54 = scmp.eq.s32.totalorder %s14, 0
      %p55 = por %p53, %p54
      %p56 = scmp.ne.s32.totalorder %s48, %s50
      %p57 = scmp.eq.s32.totalorder %s19, 1
      %p58 = por %p56, %p57
      %p59 = scmp.ne.s32.totalorder %s50, %s51
      %p60 = scmp.eq.s32.totalorder %s19, 0
      %p61 = por %p59, %p60
      %p62 = scmp.ne.s32.totalorder %s50, %s51
      %p63 = scmp.eq.s32.totalorder %s20, 1
      %p64 = por %p62, %p63
      %p66 = scmp.ne.s32.totalorder %s51, %s65
      %p67 = scmp.eq.s32.totalorder %s20, 0
      %p68 = por %p66, %p67
      %s70 = sadd.s32 %s69, 1
      %p73 = scmp.eq.s32.totalorder %s14, 1
      %p74 = scmp.ne.s32.totalorder %s69, %s71
      %p75 = scmp.eq.s32.totalorder %s14, 0
      %p76 = por %p74, %p75
      %p77 = scmp.ne.s32.totalorder %s69, %s71
      %p78 = scmp.eq.s32.totalorder %s19, 1
      %p79 = por %p77, %p78
      %p80 = scmp.ne.s32.totalorder %s71, %s72
      %p81 = scmp.eq.s32.totalorder %s19, 0
      %p82 = por %p80, %p81
      %p83 = scmp.ne.s32.totalorder %s71, %s72
      %p84 = scmp.eq.s32.totalorder %s20, 1
      %p85 = por %p83, %p84
      %p87 = scmp.ne.s32.totalorder %s72, %s86
      %p88 = scmp.eq.s32.totalorder %s20, 0
      %p89 = por %p87, %p88
      %s91 = sadd.s32 %s90, 1
      %p94 = scmp.eq.s32.totalorder %s14, 1
      %p95 = scmp.ne.s32.totalorder %s90, %s92
      %p96 = scmp.eq.s32.totalorder %s14, 0
      %p97 = por %p95, %p96
      %p98 = scmp.ne.s32.totalorder %s90, %s92
      %p99 = scmp.eq.s32.totalorder %s19, 1
      %p100 = por %p98, %p99
      %p101 = scmp.ne.s32.totalorder %s92, %s93
      %p102 = scmp.eq.s32.totalorder %s19, 0
      %p103 = por %p101, %p102
      %p104 = scmp.ne.s32.totalorder %s92, %s93
      %p105 = scmp.eq.s32.totalorder %s20, 1
      %p106 = por %p104, %p105
      %p108 = scmp.ne.s32.totalorder %s93, %s107
      %p109 = scmp.eq.s32.totalorder %s20, 0
      %p110 = por %p108, %p109
      %s112 = sadd.s32 %s111, 1
      %p115 = scmp.eq.s32.totalorder %s14, 1
      %p116 = scmp.ne.s32.totalorder %s111, %s113
      %p117 = scmp.eq.s32.totalorder %s14, 0
      %p118 = por %p116, %p117
      %p119 = scmp.ne.s32.totalorder %s111, %s113
      %p120 = scmp.eq.s32.totalorder %s19, 1
      %p121 = por %p119, %p120
      %p122 = scmp.ne.s32.totalorder %s113, %s114
      %p123 = scmp.eq.s32.totalorder %s19, 0
      %p124 = por %p122, %p123
      %p125 = scmp.ne.s32.totalorder %s113, %s114
      %p126 = scmp.eq.s32.totalorder %s20, 1
      %p127 = por %p125, %p126
      %p129 = scmp.ne.s32.totalorder %s114, %s128
      %p130 = scmp.eq.s32.totalorder %s20, 0
      %p131 = por %p129, %p130
      %s132 = ssub.s32 %s14, %s21
      %p133 = scmp.eq.s32.totalorder %s132, 0
      %s135 = sadd.s32 %s134, 1
      %s136 = scalar_select %p133, %s134, %s135
      %p139 = pneg %p133
      %p140 = scmp.eq.s32.totalorder %s14, 1
      %p141 = por %p139, %p140
      %p142 = scmp.ne.s32.totalorder %s134, %s137
      %p143 = scmp.eq.s32.totalorder %s14, 0
      %p144 = por %p142, %p143
      %p145 = scmp.ne.s32.totalorder %s134, %s137
      %p146 = scmp.eq.s32.totalorder %s19, 1
      %p147 = por %p145, %p146
      %p148 = scmp.ne.s32.totalorder %s137, %s138
      %p149 = scmp.eq.s32.totalorder %s19, 0
      %p150 = por %p148, %p149
      %p151 = scmp.ne.s32.totalorder %s137, %s138
      %p152 = scmp.eq.s32.totalorder %s20, 1
      %p153 = por %p151, %p152
      %p155 = scmp.ne.s32.totalorder %s138, %s154
      %p156 = scmp.eq.s32.totalorder %s20, 0
      %p157 = por %p155, %p156
      %p158 = scmp.le.s32.totalorder 1, %s14
      %p159 = scmp.lt.s32.totalorder %s14, 3
      %p160 = pnand %p158, %p159
      %p161 = pneg %p160
      // Predicated region
      $region9: #{_lambda_.1} parent=5 // pred_check
        _
      $region10: #{_lambda_.1} parent=5 // pred_check_branch
        %163 = sbr.rel (%p160) target = $region12
      $region11: #{_lambda_.1} parent=5 // pred_region
        %s164 = ssub.s32 %s14, 1
        // Predicated region
        $region13: #{_lambda_.1} parent=11 // pred_check
          %p165 = pneg %p61
        $region14: #{_lambda_.1} parent=11 // pred_check_branch
          %167 = sbr.rel (%p165) target = $region16
        $region15: #{_lambda_.1} parent=11 // pred_region
          _
        $region16: #{_lambda_.1} parent=11 // pred_fallthru
          _
        // Predicated region
        $region17: #{_lambda_.1} parent=11 // pred_check
          %p168 = pneg %p82
        $region18: #{_lambda_.1} parent=11 // pred_check_branch
          %170 = sbr.rel (%p168) target = $region20
        $region19: #{_lambda_.1} parent=11 // pred_region
          _
        $region20: #{_lambda_.1} parent=11 // pred_fallthru
          _
        // Predicated region
        $region21: #{_lambda_.1} parent=11 // pred_check
          %p171 = pneg %p103
        $region22: #{_lambda_.1} parent=11 // pred_check_branch
          %173 = sbr.rel (%p171) target = $region24
        $region23: #{_lambda_.1} parent=11 // pred_region
          _
        $region24: #{_lambda_.1} parent=11 // pred_fallthru
          _
        // Predicated region
        $region25: #{_lambda_.1} parent=11 // pred_check
          %p174 = pneg %p124
        $region26: #{_lambda_.1} parent=11 // pred_check_branch
          %176 = sbr.rel (%p174) target = $region28
        $region27: #{_lambda_.1} parent=11 // pred_region
          _
        $region28: #{_lambda_.1} parent=11 // pred_fallthru
          _
      $region12: #{_lambda_.1} parent=5 // pred_fallthru
        _
      %p177 = scmp.lt.s32.totalorder %s14, 2
      // Predicated region
      $region29: #{_lambda_.1} parent=5 // pred_check
        %p178 = pneg %p177
      $region30: #{_lambda_.1} parent=5 // pred_check_branch
        %180 = sbr.rel (%p178) target = $region32
      $region31: #{_lambda_.1} parent=5 // pred_region
        // Predicated region
        $region33: #{_lambda_.1} parent=31 // pred_check
          %p181 = pneg %p34
        $region34: #{_lambda_.1} parent=31 // pred_check_branch
          %183 = sbr.rel (%p181) target = $region36
        $region35: #{_lambda_.1} parent=31 // pred_region
          %p184 = scmp.lt.s32.totalorder %s14, 1
          %s185 = scalar_select %p184, %s14, 1
          %s186 = smul.addr %s185, 5
          %s187 = smul.addr %s186, 4
          %s188 = scalar_lea.vmem %s0, %s187
        $region36: #{_lambda_.1} parent=31 // pred_fallthru
          _
      $region32: #{_lambda_.1} parent=5 // pred_fallthru
        _
      %p189 = scmp.le.s32.totalorder 1, %s14
      %p190 = scmp.lt.s32.totalorder %s14, 3
      %p191 = pnand %p189, %p190
      %p192 = pneg %p191
      // Predicated region
      $region37: #{_lambda_.1} parent=5 // pred_check
        _
      $region38: #{_lambda_.1} parent=5 // pred_check_branch
        %194 = sbr.rel (%p191) target = $region40
      $region39: #{_lambda_.1} parent=5 // pred_region
        %s195 = ssub.s32 %s14, 1
        %p196 = scmp.lt.s32.totalorder %s19, 1
        %s197 = scalar_select %p196, %s19, 1
        %s198 = smul.addr %s197, 5
        %s199 = smul.addr %s198, 4
        %s200 = scalar_lea.vmem %s0, %s199
        %p201 = pneg %p40
        %p202 = pneg %p37
        %p203 = pneg %p61
        %p204 = pneg %p58
        %p205 = pneg %p82
        %p206 = pneg %p79
        %p207 = pneg %p103
        %p208 = pneg %p100
        %p209 = pneg %p124
        %p210 = pneg %p121
        %p211 = pneg %p150
        %p212 = pneg %p147
        %s213 = sand.u32 %s137, 1
        %s214 = scalar_lea.sflag [#allocation4], %s213
        %s215 = sand.u32 %s137, 1
        %s216 = smul.addr %s215, 16
        %s217 = scalar_lea.vmem [#allocation3], %s216
        %p218 = scmp.lt.s32.totalorder %s19, 1
        %s219 = scalar_select %p218, %s19, 1
        %s220 = smul.addr %s219, 5
        %s221 = smul.addr %s220, 4
        %s222 = scalar_lea.vmem %s0, %s221
        %vm224 = vcmask 125952
        %225 = vst.msk [vmem:[#allocation2] sm:$0xf] %vm224, 0
        %226 = vst.msk [vmem:[#allocation2 + $0x4] sm:$0xf] %vm224, 0
        %227 = vst.msk [vmem:[#allocation2 + $0x8] sm:$0xf] %vm224, 0
        %228 = vst.msk [vmem:[#allocation2 + $0xc] sm:$0xf] %vm224, 0
        %vm229 = vcmask 123904
        %230 = vst.msk [vmem:[#allocation2 + $0x10] sm:$0x3] %vm229, 0
        %231 = vst.msk [vmem:[#allocation2 + $0x14] sm:$0xf] %vm224, 0
        %232 = vst.msk [vmem:[#allocation2 + $0x18] sm:$0xf] %vm224, 0
        %233 = vst.msk [vmem:[#allocation2 + $0x1c] sm:$0xf] %vm224, 0
        %234 = vst.msk [vmem:[#allocation2 + $0x20] sm:$0xf] %vm224, 0
        %235 = vst.msk [vmem:[#allocation2 + $0x24] sm:$0x3] %vm229, 0
        %236 = vst.msk [vmem:[#allocation2 + $0x28] sm:$0xf] %vm224, 0
        %237 = vst.msk [vmem:[#allocation2 + $0x2c] sm:$0xf] %vm224, 0
        %238 = vst.msk [vmem:[#allocation2 + $0x30] sm:$0xf] %vm224, 0
        %239 = vst.msk [vmem:[#allocation2 + $0x34] sm:$0xf] %vm224, 0
        %240 = vst.msk [vmem:[#allocation2 + $0x38] sm:$0x3] %vm229, 0
        %241 = vst.msk [vmem:[#allocation2 + $0x3c] sm:$0xf] %vm224, 0
        %242 = vst.msk [vmem:[#allocation2 + $0x40] sm:$0xf] %vm224, 0
        %243 = vst.msk [vmem:[#allocation2 + $0x44] sm:$0xf] %vm224, 0
        %244 = vst.msk [vmem:[#allocation2 + $0x48] sm:$0xf] %vm224, 0
        %245 = vst.msk [vmem:[#allocation2 + $0x4c] sm:$0x3] %vm229, 0
        %v246 = vld [vmem:[%s222] sm:$0x8]
        %v247 = vld [vmem:[%s222 + $0x4] sm:$0xf]
        %v248 = vld [vmem:[%s222 + $0x8] sm:$0xf]
        %v249 = vld [vmem:[%s222 + $0xc] sm:$0x7]
        %v250 = vld [vmem:[%s1] sm:$0xf]
        %v251 = vld [vmem:[%s1 + $0x4] sm:$0xf]
        %v252 = vld [vmem:[%s1 + $0x8] sm:$0xf]
        %v253 = vld [vmem:[%s1 + $0xc] sm:$0xf]
        %v254 = vld [vmem:[%s1 + $0x10] sm:$0xf]
        %v255 = vld [vmem:[%s1 + $0x14] sm:$0xf]
        %v256 = vld [vmem:[%s2] sm:$0x1]
        %v258 = vlaneseq
        %v259 = vshrl.u32 %v258, 7
        %v260 = vsub.s32 0, %v259
        %v261 = vrot.slane %v256, %v260
        %v267 = vunpack.c.l.b16 %v246
        %v268 = vunpack.c.l.b16 %v247
        %v269 = vunpack.c.l.b16 %v248
        %v270 = vunpack.c.l.b16 %v249
        %v271 = vpack.c.b16 %v268, %v267
        %v272 = vpack.c.b16 %v270, %v269
        %vm273 = vcmask 1044480
        %v274 = vrot.slane %v271, 3
        %v275 = vrot.slane %v272, 3
        %v276 = vsel %vm273, %v274, %v275
        %v283 = vunpack.c.l.b16 %v250
        %v284 = vunpack.c.l.b16 %v251
        %v285 = vunpack.c.l.b16 %v252
        %v286 = vunpack.c.l.b16 %v253
        %v287 = vunpack.c.l.b16 %v254
        %v288 = vunpack.c.l.b16 %v255
        %v289 = vpack.c.b16 %v284, %v283
        %v290 = vpack.c.b16 %v286, %v285
        %v291 = vpack.c.b16 %v288, %v287
        %vm295 = vcmask 392192
        %v297 = vsel %vm295, %v276, 0
        %v300 = vsel %vm295, %v275, 0
        %302 = vmatprep.subr.bf16.mxu0 0
        %303 = vmatpush1.bf16.msra.mxu0 0
        %304 = vmatprep.subr.bf16.mxu0 0
        %305 = vmatpush1.bf16.msra.mxu0 0
        %306 = vmatprep.subr.bf16.mxu0 0
        %307 = vmatpush1.bf16.msra.mxu0 0
        %308 = vmatprep.subr.bf16.mxu0 0
        %309 = vmatpush1.bf16.msra.mxu0 0
        %310 = vmatprep.subr.bf16.mxu0 0
        %311 = vmatpush1.bf16.msra.mxu0 0
        %312 = vmatprep.subr.bf16.mxu0 0
        %313 = vmatpush1.bf16.msra.mxu0 %v291
        %314 = vmatprep.subr.bf16.mxu0 0
        %315 = vmatpush1.bf16.msra.mxu0 %v290
        %316 = vmatprep.subr.bf16.mxu0 0
        %317 = vmatpush1.bf16.msra.mxu0 %v289
        %318 = vmatprep.subr.bf16.mxu0 0
        %319 = vmatpush2.bf16.msra.mxu0 0
        %320 = vmatprep.subr.bf16.mxu0 0
        %321 = vmatpush2.bf16.msra.mxu0 0
        %322 = vmatprep.subr.bf16.mxu0 0
        %323 = vmatpush2.bf16.msra.mxu0 0
        %324 = vmatprep.subr.bf16.mxu0 0
        %325 = vmatpush2.bf16.msra.mxu0 0
        %326 = vmatprep.subr.bf16.mxu0 0
        %327 = vmatpush2.bf16.msra.mxu0 0
        %328 = vmatprep.subr.bf16.mxu0 0
        %329 = vmatpush2.bf16.msra.mxu0 0
        %330 = vmatprep.subr.bf16.mxu0 0
        %331 = vmatpush2.bf16.msra.mxu0 0
        %332 = vmatprep.subr.bf16.mxu0 0
        %333 = vmatpush2.bf16.msra.mxu0 0
        %334 = vmatprep.mubr.bf16.mxu0 0
        %335 = vmatmul.mubr.bf16.gmra.mxu0 %v297
        %v336 = vpop.f32.mrf.mxu0
        %v337 = vadd.f32 %v261, %v336
        %v338 = vpop.f32.mrf.mxu0
        %v339 = vpop.f32.mrf.mxu0
        %v340 = vadd.f32 %v261, %v339
        %v341 = vpop.f32.mrf.mxu0
        %342 = vmatprep.mubr.bf16.mxu0 0
        %343 = vmatmul.mubr.bf16.gmra.mxu0 %v300
        %v344 = vpop.f32.mrf.mxu0
        %v345 = vadd.f32 %v261, %v344
        %v346 = vpop.f32.mrf.mxu0
        %v347 = vpop.f32.mrf.mxu0
        %v348 = vpop.f32.mrf.mxu0
        %349 = vdwg.mxu0
        %v350 = vlaneseq
        %v351 = vshrl.u32 %v350, 7
        %v352 = vadd.s32 %v351, 8
        %v353 = vadd.s32 %v351, 16
        %vm354 = vcmp.lt.s32.totalorder %v351, 0
        %v355 = vsub.s32 0, %v351
        %v356 = vsel %vm354, %v355, %v351
        %v357 = vmul.u32.u64.compose %v356, 2863311531
        %v358 = vextract.low.u32 %v357
        %v359 = vextract.high.u32 %v357
        %v360 = vshrl.u32 %v359, 2
        %v361 = vmul.u32 %v360, 6
        %v362 = vsub.s32 %v356, %v361
        %v363 = vsub.s32 0, %v362
        %v364 = vsel %vm354, %v363, %v362
        %vm365 = vcmp.lt.s32.totalorder %v352, 0
        %v366 = vsub.s32 0, %v352
        %v367 = vsel %vm365, %v366, %v352
        %v368 = vmul.u32.u64.compose %v367, 2863311531
        %v369 = vextract.low.u32 %v368
        %v370 = vextract.high.u32 %v368
        %v371 = vshrl.u32 %v370, 2
        %v372 = vmul.u32 %v371, 6
        %v373 = vsub.s32 %v367, %v372
        %v374 = vsub.s32 0, %v373
        %v375 = vsel %vm365, %v374, %v373
        %vm376 = vcmp.lt.s32.totalorder %v353, 0
        %v377 = vsub.s32 0, %v353
        %v378 = vsel %vm376, %v377, %v353
        %v379 = vmul.u32.u64.compose %v378, 2863311531
        %v380 = vextract.low.u32 %v379
        %v381 = vextract.high.u32 %v379
        %v382 = vshrl.u32 %v381, 2
        %v383 = vmul.u32 %v382, 6
        %v384 = vsub.s32 %v378, %v383
        %v385 = vsub.s32 0, %v384
        %v386 = vsel %vm376, %v385, %v384
        %vm387 = vcmp.ne.s32.totalorder %v364, 0
        %vm388 = vcmp.ne.s32.totalorder %v375, 0
        %vm389 = vcmp.ne.s32.totalorder %v386, 0
        %vm390 = vcmp.lt.s32.totalorder %v364, 0
        %vm391 = vcmp.lt.s32.totalorder %v375, 0
        %vm392 = vcmp.lt.s32.totalorder %v386, 0
        %vm393 = vmand %vm390, %vm387
        %vm394 = vmand %vm391, %vm388
        %vm395 = vmand %vm392, %vm389
        %v396 = vadd.s32 %v364, 6
        %v397 = vadd.s32 %v375, 6
        %v398 = vadd.s32 %v386, 6
        %v399 = vsel %vm393, %v396, %v364
        %v400 = vsel %vm394, %v397, %v375
        %v401 = vsel %vm395, %v398, %v386
        %vm402 = vcmp.ge.s32.totalorder %v399, 1
        %vm403 = vcmp.ge.s32.totalorder %v400, 1
        %vm404 = vcmp.ge.s32.totalorder %v401, 1
        %vm405 = vcmp.lt.s32.totalorder %v399, 5
        %vm406 = vcmp.lt.s32.totalorder %v400, 5
        %vm407 = vcmp.lt.s32.totalorder %v401, 5
        %vm408 = vmand %vm402, %vm405
        %vm409 = vmand %vm403, %vm406
        %vm410 = vmand %vm404, %vm407
        %v411 = vsel %vm408, 1, 0
        %v412 = vsel %vm409, 1, 0
        %v413 = vsel %vm410, 1, 0
        %vm414 = vcmp.eq.s32.totalorder %v411, 1
        %vm415 = vcmp.eq.s32.totalorder %v412, 1
        %vm416 = vcmp.eq.s32.totalorder %v413, 1
        %v417 = vsel %vm414, %v337, 0.0
        %v418 = vsel %vm415, %v340, 0.0
        %v419 = vsel %vm416, %v345, 0.0
        %v420 = vpack.c.bf16 %v418, %v417
        %v421 = vpack.c.bf16 %v419, %v419
        %v424 = vunpack.c.l.b16 %v420
        %v425 = vunpack.c.h.b16 %v420
        %v426 = vunpack.c.l.b16 %v421
        %v427 = vpack.c.b16 %v424, %v424
        %v428 = vpack.c.b16 %v425, %v425
        %v429 = vpack.c.b16 %v426, %v426
        %vm430 = vcmask 1042432
        %vm431 = vcmask 1046532
        %vm432 = vmor %vm430, %vm431
        %v433 = vrot.slane %v427, 5
        %v434 = vrot.slane %v433, 4
        %v435 = vrot.slane %v428, 5
        %v436 = vsel %vm432, %v434, %v435
        %v437 = vrot.slane %v435, 4
        %v438 = vrot.slane %v429, 5
        %v439 = vsel %vm432, %v437, %v438
        %v440 = vrot.slane %v438, 4
        %vm445 = vcmask 125955
        %446 = vst.msk [vmem:[#allocation2] sm:$0x8] %vm445, %v433
        %447 = vst.msk [vmem:[#allocation2 + $0x4] sm:$0xf] %vm224, %v436
        %448 = vst.msk [vmem:[#allocation2 + $0x8] sm:$0xf] %vm224, %v439
        %vm449 = vcmask 124928
        %450 = vst.msk [vmem:[#allocation2 + $0xc] sm:$0x7] %vm449, %v440
        %v451 = vld [vmem:[%s222] sm:$0x8]
        %v452 = vld [vmem:[%s222 + $0x4] sm:$0xf]
        %v453 = vld [vmem:[%s222 + $0x8] sm:$0xf]
        %v454 = vld [vmem:[%s222 + $0xc] sm:$0x7]
        %s455 = scalar_lea.vmem %s1, 96
        %v456 = vld [vmem:[%s455] sm:$0xf]
        %v457 = vld [vmem:[%s455 + $0x4] sm:$0xf]
        %v458 = vld [vmem:[%s455 + $0x8] sm:$0xf]
        %v459 = vld [vmem:[%s455 + $0xc] sm:$0xf]
        %v460 = vld [vmem:[%s455 + $0x10] sm:$0xf]
        %v461 = vld [vmem:[%s455 + $0x14] sm:$0xf]
        %v462 = vld [vmem:[%s222 + $0xc] sm:$0xf]
        %s463 = scalar_lea.vmem %s1, 120
        %v464 = vld [vmem:[%s463] sm:$0xf]
        %v465 = vld [vmem:[%s463 + $0x4] sm:$0xf]
        %v466 = vld [vmem:[%s463 + $0x8] sm:$0xf]
        %v467 = vld [vmem:[%s463 + $0xc] sm:$0xf]
        %v468 = vld [vmem:[%s463 + $0x10] sm:$0xf]
        %v469 = vld [vmem:[%s463 + $0x14] sm:$0xf]
        %v474 = vunpack.c.l.b16 %v451
        %v475 = vunpack.c.l.b16 %v452
        %v476 = vunpack.c.l.b16 %v453
        %v477 = vunpack.c.l.b16 %v462
        %v478 = vpack.c.b16 %v475, %v474
        %v479 = vpack.c.b16 %v477, %v476
        %vm480 = vsmask.f32 4352
        %v482 = vshrl.u32 %v478, 16
        %v484 = vrot.slane %v482, 3
        %v485 = vshll.u32 %v478, 16
        %v487 = vrot.slane %v485, 4
        %v488 = vor.u32 %v484, %v487
        %v490 = vshrl.u32 %v479, 16
        %v492 = vrot.slane %v490, 3
        %v493 = vshll.u32 %v479, 16
        %v495 = vrot.slane %v493, 4
        %v496 = vor.u32 %v492, %v495
        %v497 = vsel %vm480, %v488, %v496
        %v504 = vunpack.c.l.b16 %v464
        %v505 = vunpack.c.l.b16 %v465
        %v506 = vunpack.c.l.b16 %v466
        %v507 = vunpack.c.l.b16 %v467
        %v508 = vunpack.c.l.b16 %v468
        %v509 = vunpack.c.l.b16 %v469
        %v510 = vpack.c.b16 %v505, %v504
        %v511 = vpack.c.b16 %v507, %v506
        %v512 = vpack.c.b16 %v509, %v508
        %v517 = vsel %vm295, %v497, 0
        %v520 = vsel %vm295, %v496, 0
        %522 = vmatprep.subr.bf16.mxu0 0
        %523 = vmatpush1.bf16.msra.mxu0 0
        %524 = vmatprep.subr.bf16.mxu0 0
        %525 = vmatpush1.bf16.msra.mxu0 0
        %526 = vmatprep.subr.bf16.mxu0 0
        %527 = vmatpush1.bf16.msra.mxu0 0
        %528 = vmatprep.subr.bf16.mxu0 0
        %529 = vmatpush1.bf16.msra.mxu0 0
        %530 = vmatprep.subr.bf16.mxu0 0
        %531 = vmatpush1.bf16.msra.mxu0 0
        %532 = vmatprep.subr.bf16.mxu0 0
        %533 = vmatpush1.bf16.msra.mxu0 %v512
        %534 = vmatprep.subr.bf16.mxu0 0
        %535 = vmatpush1.bf16.msra.mxu0 %v511
        %536 = vmatprep.subr.bf16.mxu0 0
        %537 = vmatpush1.bf16.msra.mxu0 %v510
        %538 = vmatprep.subr.bf16.mxu0 0
        %539 = vmatpush2.bf16.msra.mxu0 0
        %540 = vmatprep.subr.bf16.mxu0 0
        %541 = vmatpush2.bf16.msra.mxu0 0
        %542 = vmatprep.subr.bf16.mxu0 0
        %543 = vmatpush2.bf16.msra.mxu0 0
        %544 = vmatprep.subr.bf16.mxu0 0
        %545 = vmatpush2.bf16.msra.mxu0 0
        %546 = vmatprep.subr.bf16.mxu0 0
        %547 = vmatpush2.bf16.msra.mxu0 0
        %548 = vmatprep.subr.bf16.mxu0 0
        %549 = vmatpush2.bf16.msra.mxu0 0
        %550 = vmatprep.subr.bf16.mxu0 0
        %551 = vmatpush2.bf16.msra.mxu0 0
        %552 = vmatprep.subr.bf16.mxu0 0
        %553 = vmatpush2.bf16.msra.mxu0 0
        %554 = vmatprep.mubr.bf16.mxu0 0
        %555 = vmatmul.mubr.bf16.gmra.mxu0 %v517
        %v556 = vpop.f32.mrf.mxu0
        %v557 = vadd.f32 0.0, %v556
        %v558 = vpop.f32.mrf.mxu0
        %v559 = vpop.f32.mrf.mxu0
        %v560 = vadd.f32 0.0, %v559
        %v561 = vpop.f32.mrf.mxu0
        %562 = vmatprep.mubr.bf16.mxu0 0
        %563 = vmatmul.mubr.bf16.gmra.mxu0 %v520
        %v564 = vpop.f32.mrf.mxu0
        %v565 = vadd.f32 0.0, %v564
        %v566 = vpop.f32.mrf.mxu0
        %v567 = vpop.f32.mrf.mxu0
        %v568 = vpop.f32.mrf.mxu0
        %569 = vdwg.mxu0
        %v571 = vunpack.c.l.b16 %v454
        %v572 = vpack.c.b16 %v571, %v476
        %v573 = vrot.slane %v478, 3
        %v574 = vrot.slane %v572, 3
        %v575 = vsel %vm273, %v573, %v574
        %v582 = vunpack.c.l.b16 %v456
        %v583 = vunpack.c.l.b16 %v457
        %v584 = vunpack.c.l.b16 %v458
        %v585 = vunpack.c.l.b16 %v459
        %v586 = vunpack.c.l.b16 %v460
        %v587 = vunpack.c.l.b16 %v461
        %v588 = vpack.c.b16 %v583, %v582
        %v589 = vpack.c.b16 %v585, %v584
        %v590 = vpack.c.b16 %v587, %v586
        %v595 = vsel %vm295, %v575, 0
        %v598 = vsel %vm295, %v574, 0
        %600 = vmatprep.subr.bf16.mxu0 0
        %601 = vmatpush1.bf16.msra.mxu0 0
        %602 = vmatprep.subr.bf16.mxu0 0
        %603 = vmatpush1.bf16.msra.mxu0 0
        %604 = vmatprep.subr.bf16.mxu0 0
        %605 = vmatpush1.bf16.msra.mxu0 0
        %606 = vmatprep.subr.bf16.mxu0 0
        %607 = vmatpush1.bf16.msra.mxu0 0
        %608 = vmatprep.subr.bf16.mxu0 0
        %609 = vmatpush1.bf16.msra.mxu0 0
        %610 = vmatprep.subr.bf16.mxu0 0
        %611 = vmatpush1.bf16.msra.mxu0 %v590
        %612 = vmatprep.subr.bf16.mxu0 0
        %613 = vmatpush1.bf16.msra.mxu0 %v589
        %614 = vmatprep.subr.bf16.mxu0 0
        %615 = vmatpush1.bf16.msra.mxu0 %v588
        %616 = vmatprep.subr.bf16.mxu0 0
        %617 = vmatpush2.bf16.msra.mxu0 0
        %618 = vmatprep.subr.bf16.mxu0 0
        %619 = vmatpush2.bf16.msra.mxu0 0
        %620 = vmatprep.subr.bf16.mxu0 0
        %621 = vmatpush2.bf16.msra.mxu0 0
        %622 = vmatprep.subr.bf16.mxu0 0
        %623 = vmatpush2.bf16.msra.mxu0 0
        %624 = vmatprep.subr.bf16.mxu0 0
        %625 = vmatpush2.bf16.msra.mxu0 0
        %626 = vmatprep.subr.bf16.mxu0 0
        %627 = vmatpush2.bf16.msra.mxu0 0
        %628 = vmatprep.subr.bf16.mxu0 0
        %629 = vmatpush2.bf16.msra.mxu0 0
        %630 = vmatprep.subr.bf16.mxu0 0
        %631 = vmatpush2.bf16.msra.mxu0 0
        %632 = vmatprep.mubr.bf16.mxu0 0
        %633 = vmatmul.mubr.bf16.gmra.mxu0 %v595
        %v634 = vpop.f32.mrf.mxu0
        %v635 = vadd.f32 %v557, %v634
        %v636 = vpop.f32.mrf.mxu0
        %v637 = vpop.f32.mrf.mxu0
        %v638 = vadd.f32 %v560, %v637
        %v639 = vpop.f32.mrf.mxu0
        %640 = vmatprep.mubr.bf16.mxu0 0
        %641 = vmatmul.mubr.bf16.gmra.mxu0 %v598
        %v642 = vpop.f32.mrf.mxu0
        %v643 = vadd.f32 %v565, %v642
        %v644 = vpop.f32.mrf.mxu0
        %v645 = vpop.f32.mrf.mxu0
        %v646 = vpop.f32.mrf.mxu0
        %647 = vdwg.mxu0
        %v648 = vld [vmem:[%s2] sm:$0x1]
        %v650 = vlaneseq
        %v651 = vshrl.u32 %v650, 7
        %v652 = vsub.s32 0, %v651
        %v653 = vrot.slane %v648, %v652
        %v655 = vadd.f32 %v635, %v653
        %v656 = vadd.f32 %v638, %v653
        %v657 = vadd.f32 %v643, %v653
        %vm658 = vcmp.ge.s32.totalorder %v399, 0
        %vm659 = vcmp.ge.s32.totalorder %v400, 0
        %vm660 = vcmp.ge.s32.totalorder %v401, 0
        %vm661 = vcmp.lt.s32.totalorder %v399, 4
        %vm662 = vcmp.lt.s32.totalorder %v400, 4
        %vm663 = vcmp.lt.s32.totalorder %v401, 4
        %vm664 = vmand %vm658, %vm661
        %vm665 = vmand %vm659, %vm662
        %vm666 = vmand %vm660, %vm663
        %v667 = vsel %vm664, 1, 0
        %v668 = vsel %vm665, 1, 0
        %v669 = vsel %vm666, 1, 0
        %vm670 = vcmp.eq.s32.totalorder %v667, 1
        %vm671 = vcmp.eq.s32.totalorder %v668, 1
        %vm672 = vcmp.eq.s32.totalorder %v669, 1
        %v673 = vsel %vm670, %v655, 0.0
        %v674 = vsel %vm671, %v656, 0.0
        %v675 = vsel %vm672, %v657, 0.0
        %v676 = vpack.c.bf16 %v674, %v673
        %v677 = vpack.c.bf16 %v675, %v675
        %v680 = vunpack.c.l.b16 %v676
        %v681 = vunpack.c.h.b16 %v676
        %v682 = vunpack.c.l.b16 %v677
        %v683 = vpack.c.b16 %v680, %v680
        %v684 = vpack.c.b16 %v681, %v681
        %v685 = vpack.c.b16 %v682, %v682
        %v686 = vrot.slane %v683, 5
        %v687 = vrot.slane %v686, 4
        %v688 = vrot.slane %v684, 5
        %v689 = vsel %vm432, %v687, %v688
        %v690 = vrot.slane %v688, 4
        %v691 = vrot.slane %v685, 5
        %v692 = vsel %vm432, %v690, %v691
        %v693 = vrot.slane %v691, 4
        %s698 = scalar_lea.vmem [#allocation2], 20
        %699 = vst.msk [vmem:[%s698] sm:$0x8] %vm445, %v686
        %700 = vst.msk [vmem:[%s698 + $0x4] sm:$0xf] %vm224, %v689
        %701 = vst.msk [vmem:[%s698 + $0x8] sm:$0xf] %vm224, %v692
        %702 = vst.msk [vmem:[%s698 + $0xc] sm:$0x7] %vm449, %v693
        %v703 = vld [vmem:[%s222] sm:$0xf]
        %v704 = vld [vmem:[%s222 + $0x4] sm:$0xf]
        %v705 = vld [vmem:[%s222 + $0x8] sm:$0xf]
        %s706 = scalar_lea.vmem %s1, 192
        %v707 = vld [vmem:[%s706] sm:$0xf]
        %v708 = vld [vmem:[%s706 + $0x4] sm:$0xf]
        %v709 = vld [vmem:[%s706 + $0x8] sm:$0xf]
        %v710 = vld [vmem:[%s706 + $0xc] sm:$0xf]
        %v711 = vld [vmem:[%s706 + $0x10] sm:$0xf]
        %v712 = vld [vmem:[%s706 + $0x14] sm:$0xf]
        %v713 = vld [vmem:[%s222] sm:$0x8]
        %v714 = vld [vmem:[%s222 + $0xc] sm:$0x7]
        %s715 = scalar_lea.vmem %s1, 240
        %v716 = vld [vmem:[%s715] sm:$0xf]
        %v717 = vld [vmem:[%s715 + $0x4] sm:$0xf]
        %v718 = vld [vmem:[%s715 + $0x8] sm:$0xf]
        %v719 = vld [vmem:[%s715 + $0xc] sm:$0xf]
        %v720 = vld [vmem:[%s715 + $0x10] sm:$0xf]
        %v721 = vld [vmem:[%s715 + $0x14] sm:$0xf]
        %v726 = vunpack.c.l.b16 %v713
        %v727 = vunpack.c.l.b16 %v704
        %v728 = vunpack.c.l.b16 %v705
        %v729 = vunpack.c.l.b16 %v714
        %v730 = vpack.c.b16 %v727, %v726
        %v731 = vpack.c.b16 %v729, %v728
        %v732 = vrot.slane %v730, 3
        %v733 = vrot.slane %v731, 3
        %v734 = vsel %vm273, %v732, %v733
        %v741 = vunpack.c.l.b16 %v716
        %v742 = vunpack.c.l.b16 %v717
        %v743 = vunpack.c.l.b16 %v718
        %v744 = vunpack.c.l.b16 %v719
        %v745 = vunpack.c.l.b16 %v720
        %v746 = vunpack.c.l.b16 %v721
        %v747 = vpack.c.b16 %v742, %v741
        %v748 = vpack.c.b16 %v744, %v743
        %v749 = vpack.c.b16 %v746, %v745
        %v754 = vsel %vm295, %v734, 0
        %v757 = vsel %vm295, %v733, 0
        %759 = vmatprep.subr.bf16.mxu0 0
        %760 = vmatpush1.bf16.msra.mxu0 0
        %761 = vmatprep.subr.bf16.mxu0 0
        %762 = vmatpush1.bf16.msra.mxu0 0
        %763 = vmatprep.subr.bf16.mxu0 0
        %764 = vmatpush1.bf16.msra.mxu0 0
        %765 = vmatprep.subr.bf16.mxu0 0
        %766 = vmatpush1.bf16.msra.mxu0 0
        %767 = vmatprep.subr.bf16.mxu0 0
        %768 = vmatpush1.bf16.msra.mxu0 0
        %769 = vmatprep.subr.bf16.mxu0 0
        %770 = vmatpush1.bf16.msra.mxu0 %v749
        %771 = vmatprep.subr.bf16.mxu0 0
        %772 = vmatpush1.bf16.msra.mxu0 %v748
        %773 = vmatprep.subr.bf16.mxu0 0
        %774 = vmatpush1.bf16.msra.mxu0 %v747
        %775 = vmatprep.subr.bf16.mxu0 0
        %776 = vmatpush2.bf16.msra.mxu0 0
        %777 = vmatprep.subr.bf16.mxu0 0
        %778 = vmatpush2.bf16.msra.mxu0 0
        %779 = vmatprep.subr.bf16.mxu0 0
        %780 = vmatpush2.bf16.msra.mxu0 0
        %781 = vmatprep.subr.bf16.mxu0 0
        %782 = vmatpush2.bf16.msra.mxu0 0
        %783 = vmatprep.subr.bf16.mxu0 0
        %784 = vmatpush2.bf16.msra.mxu0 0
        %785 = vmatprep.subr.bf16.mxu0 0
        %786 = vmatpush2.bf16.msra.mxu0 0
        %787 = vmatprep.subr.bf16.mxu0 0
        %788 = vmatpush2.bf16.msra.mxu0 0
        %789 = vmatprep.subr.bf16.mxu0 0
        %790 = vmatpush2.bf16.msra.mxu0 0
        %791 = vmatprep.mubr.bf16.mxu0 0
        %792 = vmatmul.mubr.bf16.gmra.mxu0 %v754
        %v793 = vpop.f32.mrf.mxu0
        %v794 = vadd.f32 0.0, %v793
        %v795 = vpop.f32.mrf.mxu0
        %v796 = vpop.f32.mrf.mxu0
        %v797 = vadd.f32 0.0, %v796
        %v798 = vpop.f32.mrf.mxu0
        %799 = vmatprep.mubr.bf16.mxu0 0
        %800 = vmatmul.mubr.bf16.gmra.mxu0 %v757
        %v801 = vpop.f32.mrf.mxu0
        %v802 = vadd.f32 0.0, %v801
        %v803 = vpop.f32.mrf.mxu0
        %v804 = vpop.f32.mrf.mxu0
        %v805 = vpop.f32.mrf.mxu0
        %806 = vdwg.mxu0
        %v808 = vunpack.c.l.b16 %v703
        %v809 = vpack.c.b16 %v727, %v808
        %v810 = vpack.c.b16 %v728, %v728
        %v817 = vunpack.c.l.b16 %v707
        %v818 = vunpack.c.l.b16 %v708
        %v819 = vunpack.c.l.b16 %v709
        %v820 = vunpack.c.l.b16 %v710
        %v821 = vunpack.c.l.b16 %v711
        %v822 = vunpack.c.l.b16 %v712
        %v823 = vpack.c.b16 %v818, %v817
        %v824 = vpack.c.b16 %v820, %v819
        %v825 = vpack.c.b16 %v822, %v821
        %v830 = vsel %vm295, %v809, 0
        %v833 = vsel %vm295, %v810, 0
        %835 = vmatprep.subr.bf16.mxu0 0
        %836 = vmatpush1.bf16.msra.mxu0 0
        %837 = vmatprep.subr.bf16.mxu0 0
        %838 = vmatpush1.bf16.msra.mxu0 0
        %839 = vmatprep.subr.bf16.mxu0 0
        %840 = vmatpush1.bf16.msra.mxu0 0
        %841 = vmatprep.subr.bf16.mxu0 0
        %842 = vmatpush1.bf16.msra.mxu0 0
        %843 = vmatprep.subr.bf16.mxu0 0
        %844 = vmatpush1.bf16.msra.mxu0 0
        %845 = vmatprep.subr.bf16.mxu0 0
        %846 = vmatpush1.bf16.msra.mxu0 %v825
        %847 = vmatprep.subr.bf16.mxu0 0
        %848 = vmatpush1.bf16.msra.mxu0 %v824
        %849 = vmatprep.subr.bf16.mxu0 0
        %850 = vmatpush1.bf16.msra.mxu0 %v823
        %851 = vmatprep.subr.bf16.mxu0 0
        %852 = vmatpush2.bf16.msra.mxu0 0
        %853 = vmatprep.subr.bf16.mxu0 0
        %854 = vmatpush2.bf16.msra.mxu0 0
        %855 = vmatprep.subr.bf16.mxu0 0
        %856 = vmatpush2.bf16.msra.mxu0 0
        %857 = vmatprep.subr.bf16.mxu0 0
        %858 = vmatpush2.bf16.msra.mxu0 0
        %859 = vmatprep.subr.bf16.mxu0 0
        %860 = vmatpush2.bf16.msra.mxu0 0
        %861 = vmatprep.subr.bf16.mxu0 0
        %862 = vmatpush2.bf16.msra.mxu0 0
        %863 = vmatprep.subr.bf16.mxu0 0
        %864 = vmatpush2.bf16.msra.mxu0 0
        %865 = vmatprep.subr.bf16.mxu0 0
        %866 = vmatpush2.bf16.msra.mxu0 0
        %867 = vmatprep.mubr.bf16.mxu0 0
        %868 = vmatmul.mubr.bf16.gmra.mxu0 %v830
        %v869 = vpop.f32.mrf.mxu0
        %v870 = vadd.f32 %v794, %v869
        %v871 = vpop.f32.mrf.mxu0
        %v872 = vpop.f32.mrf.mxu0
        %v873 = vadd.f32 %v797, %v872
        %v874 = vpop.f32.mrf.mxu0
        %875 = vmatprep.mubr.bf16.mxu0 0
        %876 = vmatmul.mubr.bf16.gmra.mxu0 %v833
        %v877 = vpop.f32.mrf.mxu0
        %v878 = vadd.f32 %v802, %v877
        %v879 = vpop.f32.mrf.mxu0
        %v880 = vpop.f32.mrf.mxu0
        %v881 = vpop.f32.mrf.mxu0
        %882 = vdwg.mxu0
        %v883 = vld [vmem:[%s2] sm:$0x1]
        %v885 = vlaneseq
        %v886 = vshrl.u32 %v885, 7
        %v887 = vsub.s32 0, %v886
        %v888 = vrot.slane %v883, %v887
        %v890 = vadd.f32 %v870, %v888
        %v891 = vadd.f32 %v873, %v888
        %v892 = vadd.f32 %v878, %v888
        %v893 = vsel %vm414, %v890, 0.0
        %v894 = vsel %vm415, %v891, 0.0
        %v895 = vsel %vm416, %v892, 0.0
        %v896 = vpack.c.bf16 %v894, %v893
        %v897 = vpack.c.bf16 %v895, %v895
        %v900 = vunpack.c.l.b16 %v896
        %v901 = vunpack.c.h.b16 %v896
        %v902 = vunpack.c.l.b16 %v897
        %v903 = vpack.c.b16 %v900, %v900
        %v904 = vpack.c.b16 %v901, %v901
        %v905 = vpack.c.b16 %v902, %v902
        %s909 = scalar_lea.vmem [#allocation2], 40
        %910 = vst.msk [vmem:[%s909] sm:$0xf] %vm224, %v903
        %911 = vst.msk [vmem:[%s909 + $0x4] sm:$0xf] %vm224, %v904
        %912 = vst.msk [vmem:[%s909 + $0x8] sm:$0xf] %vm224, %v905
        %v913 = vld [vmem:[%s222] sm:$0xf]
        %v914 = vld [vmem:[%s222 + $0x4] sm:$0xf]
        %v915 = vld [vmem:[%s222 + $0x8] sm:$0xf]
        %s916 = scalar_lea.vmem %s1, 288
        %v917 = vld [vmem:[%s916] sm:$0xf]
        %v918 = vld [vmem:[%s916 + $0x4] sm:$0xf]
        %v919 = vld [vmem:[%s916 + $0x8] sm:$0xf]
        %v920 = vld [vmem:[%s916 + $0xc] sm:$0xf]
        %v921 = vld [vmem:[%s916 + $0x10] sm:$0xf]
        %v922 = vld [vmem:[%s916 + $0x14] sm:$0xf]
        %v923 = vld [vmem:[%s222 + $0xc] sm:$0x1]
        %s924 = scalar_lea.vmem %s1, 312
        %v925 = vld [vmem:[%s924] sm:$0xf]
        %v926 = vld [vmem:[%s924 + $0x4] sm:$0xf]
        %v927 = vld [vmem:[%s924 + $0x8] sm:$0xf]
        %v928 = vld [vmem:[%s924 + $0xc] sm:$0xf]
        %v929 = vld [vmem:[%s924 + $0x10] sm:$0xf]
        %v930 = vld [vmem:[%s924 + $0x14] sm:$0xf]
        %v935 = vunpack.c.l.b16 %v913
        %v936 = vunpack.c.l.b16 %v914
        %v937 = vunpack.c.l.b16 %v915
        %v938 = vunpack.c.l.b16 %v923
        %v939 = vpack.c.b16 %v936, %v935
        %v940 = vpack.c.b16 %v938, %v937
        %vm941 = vsmask.f32 7424
        %v943 = vshrl.u32 %v939, 16
        %v945 = vshll.u32 %v939, 16
        %v947 = vrot.slane %v945, 1
        %v948 = vor.u32 %v943, %v947
        %v950 = vshll.u32 %v940, 16
        %v952 = vrot.slane %v950, 1
        %v953 = vsel %vm941, %v948, %v952
        %v954 = vshrl.u32 %v940, 16
        %v956 = vor.u32 %v954, %v952
        %v963 = vunpack.c.l.b16 %v925
        %v964 = vunpack.c.l.b16 %v926
        %v965 = vunpack.c.l.b16 %v927
        %v966 = vunpack.c.l.b16 %v928
        %v967 = vunpack.c.l.b16 %v929
        %v968 = vunpack.c.l.b16 %v930
        %v969 = vpack.c.b16 %v964, %v963
        %v970 = vpack.c.b16 %v966, %v965
        %v971 = vpack.c.b16 %v968, %v967
        %v976 = vsel %vm295, %v953, 0
        %v979 = vsel %vm295, %v956, 0
        %981 = vmatprep.subr.bf16.mxu0 0
        %982 = vmatpush1.bf16.msra.mxu0 0
        %983 = vmatprep.subr.bf16.mxu0 0
        %984 = vmatpush1.bf16.msra.mxu0 0
        %985 = vmatprep.subr.bf16.mxu0 0
        %986 = vmatpush1.bf16.msra.mxu0 0
        %987 = vmatprep.subr.bf16.mxu0 0
        %988 = vmatpush1.bf16.msra.mxu0 0
        %989 = vmatprep.subr.bf16.mxu0 0
        %990 = vmatpush1.bf16.msra.mxu0 0
        %991 = vmatprep.subr.bf16.mxu0 0
        %992 = vmatpush1.bf16.msra.mxu0 %v971
        %993 = vmatprep.subr.bf16.mxu0 0
        %994 = vmatpush1.bf16.msra.mxu0 %v970
        %995 = vmatprep.subr.bf16.mxu0 0
        %996 = vmatpush1.bf16.msra.mxu0 %v969
        %997 = vmatprep.subr.bf16.mxu0 0
        %998 = vmatpush2.bf16.msra.mxu0 0
        %999 = vmatprep.subr.bf16.mxu0 0
        %1000 = vmatpush2.bf16.msra.mxu0 0
        %1001 = vmatprep.subr.bf16.mxu0 0
        %1002 = vmatpush2.bf16.msra.mxu0 0
        %1003 = vmatprep.subr.bf16.mxu0 0
        %1004 = vmatpush2.bf16.msra.mxu0 0
        %1005 = vmatprep.subr.bf16.mxu0 0
        %1006 = vmatpush2.bf16.msra.mxu0 0
        %1007 = vmatprep.subr.bf16.mxu0 0
        %1008 = vmatpush2.bf16.msra.mxu0 0
        %1009 = vmatprep.subr.bf16.mxu0 0
        %1010 = vmatpush2.bf16.msra.mxu0 0
        %1011 = vmatprep.subr.bf16.mxu0 0
        %1012 = vmatpush2.bf16.msra.mxu0 0
        %1013 = vmatprep.mubr.bf16.mxu0 0
        %1014 = vmatmul.mubr.bf16.gmra.mxu0 %v976
        %v1015 = vpop.f32.mrf.mxu0
        %v1016 = vadd.f32 0.0, %v1015
        %v1017 = vpop.f32.mrf.mxu0
        %v1018 = vpop.f32.mrf.mxu0
        %v1019 = vadd.f32 0.0, %v1018
        %v1020 = vpop.f32.mrf.mxu0
        %1021 = vmatprep.mubr.bf16.mxu0 0
        %1022 = vmatmul.mubr.bf16.gmra.mxu0 %v979
        %v1023 = vpop.f32.mrf.mxu0
        %v1024 = vadd.f32 0.0, %v1023
        %v1025 = vpop.f32.mrf.mxu0
        %v1026 = vpop.f32.mrf.mxu0
        %v1027 = vpop.f32.mrf.mxu0
        %1028 = vdwg.mxu0
        %v1029 = vpack.c.b16 %v937, %v937
        %v1036 = vunpack.c.l.b16 %v917
        %v1037 = vunpack.c.l.b16 %v918
        %v1038 = vunpack.c.l.b16 %v919
        %v1039 = vunpack.c.l.b16 %v920
        %v1040 = vunpack.c.l.b16 %v921
        %v1041 = vunpack.c.l.b16 %v922
        %v1042 = vpack.c.b16 %v1037, %v1036
        %v1043 = vpack.c.b16 %v1039, %v1038
        %v1044 = vpack.c.b16 %v1041, %v1040
        %v1048 = vsel %vm295, %v939, 0
        %v1051 = vsel %vm295, %v1029, 0
        %1053 = vmatprep.subr.bf16.mxu0 0
        %1054 = vmatpush1.bf16.msra.mxu0 0
        %1055 = vmatprep.subr.bf16.mxu0 0
        %1056 = vmatpush1.bf16.msra.mxu0 0
        %1057 = vmatprep.subr.bf16.mxu0 0
        %1058 = vmatpush1.bf16.msra.mxu0 0
        %1059 = vmatprep.subr.bf16.mxu0 0
        %1060 = vmatpush1.bf16.msra.mxu0 0
        %1061 = vmatprep.subr.bf16.mxu0 0
        %1062 = vmatpush1.bf16.msra.mxu0 0
        %1063 = vmatprep.subr.bf16.mxu0 0
        %1064 = vmatpush1.bf16.msra.mxu0 %v1044
        %1065 = vmatprep.subr.bf16.mxu0 0
        %1066 = vmatpush1.bf16.msra.mxu0 %v1043
        %1067 = vmatprep.subr.bf16.mxu0 0
        %1068 = vmatpush1.bf16.msra.mxu0 %v1042
        %1069 = vmatprep.subr.bf16.mxu0 0
        %1070 = vmatpush2.bf16.msra.mxu0 0
        %1071 = vmatprep.subr.bf16.mxu0 0
        %1072 = vmatpush2.bf16.msra.mxu0 0
        %1073 = vmatprep.subr.bf16.mxu0 0
        %1074 = vmatpush2.bf16.msra.mxu0 0
        %1075 = vmatprep.subr.bf16.mxu0 0
        %1076 = vmatpush2.bf16.msra.mxu0 0
        %1077 = vmatprep.subr.bf16.mxu0 0
        %1078 = vmatpush2.bf16.msra.mxu0 0
        %1079 = vmatprep.subr.bf16.mxu0 0
        %1080 = vmatpush2.bf16.msra.mxu0 0
        %1081 = vmatprep.subr.bf16.mxu0 0
        %1082 = vmatpush2.bf16.msra.mxu0 0
        %1083 = vmatprep.subr.bf16.mxu0 0
        %1084 = vmatpush2.bf16.msra.mxu0 0
        %1085 = vmatprep.mubr.bf16.mxu0 0
        %1086 = vmatmul.mubr.bf16.gmra.mxu0 %v1048
        %v1087 = vpop.f32.mrf.mxu0
        %v1088 = vadd.f32 %v1016, %v1087
        %v1089 = vpop.f32.mrf.mxu0
        %v1090 = vpop.f32.mrf.mxu0
        %v1091 = vadd.f32 %v1019, %v1090
        %v1092 = vpop.f32.mrf.mxu0
        %1093 = vmatprep.mubr.bf16.mxu0 0
        %1094 = vmatmul.mubr.bf16.gmra.mxu0 %v1051
        %v1095 = vpop.f32.mrf.mxu0
        %v1096 = vadd.f32 %v1024, %v1095
        %v1097 = vpop.f32.mrf.mxu0
        %v1098 = vpop.f32.mrf.mxu0
        %v1099 = vpop.f32.mrf.mxu0
        %1100 = vdwg.mxu0
        %v1101 = vld [vmem:[%s222] sm:$0x8]
        %v1102 = vld [vmem:[%s222 + $0xc] sm:$0x7]
        %s1103 = scalar_lea.vmem %s1, 336
        %v1104 = vld [vmem:[%s1103] sm:$0xf]
        %v1105 = vld [vmem:[%s1103 + $0x4] sm:$0xf]
        %v1106 = vld [vmem:[%s1103 + $0x8] sm:$0xf]
        %v1107 = vld [vmem:[%s1103 + $0xc] sm:$0xf]
        %v1108 = vld [vmem:[%s1103 + $0x10] sm:$0xf]
        %v1109 = vld [vmem:[%s1103 + $0x14] sm:$0xf]
        %v1112 = vunpack.c.l.b16 %v1101
        %v1113 = vunpack.c.l.b16 %v1102
        %v1114 = vpack.c.b16 %v936, %v1112
        %v1115 = vpack.c.b16 %v1113, %v937
        %v1116 = vrot.slane %v1114, 3
        %v1117 = vrot.slane %v1115, 3
        %v1118 = vsel %vm273, %v1116, %v1117
        %v1125 = vunpack.c.l.b16 %v1104
        %v1126 = vunpack.c.l.b16 %v1105
        %v1127 = vunpack.c.l.b16 %v1106
        %v1128 = vunpack.c.l.b16 %v1107
        %v1129 = vunpack.c.l.b16 %v1108
        %v1130 = vunpack.c.l.b16 %v1109
        %v1131 = vpack.c.b16 %v1126, %v1125
        %v1132 = vpack.c.b16 %v1128, %v1127
        %v1133 = vpack.c.b16 %v1130, %v1129
        %v1138 = vsel %vm295, %v1118, 0
        %v1141 = vsel %vm295, %v1117, 0
        %1143 = vmatprep.subr.bf16.mxu0 0
        %1144 = vmatpush1.bf16.msra.mxu0 0
        %1145 = vmatprep.subr.bf16.mxu0 0
        %1146 = vmatpush1.bf16.msra.mxu0 0
        %1147 = vmatprep.subr.bf16.mxu0 0
        %1148 = vmatpush1.bf16.msra.mxu0 0
        %1149 = vmatprep.subr.bf16.mxu0 0
        %1150 = vmatpush1.bf16.msra.mxu0 0
        %1151 = vmatprep.subr.bf16.mxu0 0
        %1152 = vmatpush1.bf16.msra.mxu0 0
        %1153 = vmatprep.subr.bf16.mxu0 0
        %1154 = vmatpush1.bf16.msra.mxu0 %v1133
        %1155 = vmatprep.subr.bf16.mxu0 0
        %1156 = vmatpush1.bf16.msra.mxu0 %v1132
        %1157 = vmatprep.subr.bf16.mxu0 0
        %1158 = vmatpush1.bf16.msra.mxu0 %v1131
        %1159 = vmatprep.subr.bf16.mxu0 0
        %1160 = vmatpush2.bf16.msra.mxu0 0
        %1161 = vmatprep.subr.bf16.mxu0 0
        %1162 = vmatpush2.bf16.msra.mxu0 0
        %1163 = vmatprep.subr.bf16.mxu0 0
        %1164 = vmatpush2.bf16.msra.mxu0 0
        %1165 = vmatprep.subr.bf16.mxu0 0
        %1166 = vmatpush2.bf16.msra.mxu0 0
        %1167 = vmatprep.subr.bf16.mxu0 0
        %1168 = vmatpush2.bf16.msra.mxu0 0
        %1169 = vmatprep.subr.bf16.mxu0 0
        %1170 = vmatpush2.bf16.msra.mxu0 0
        %1171 = vmatprep.subr.bf16.mxu0 0
        %1172 = vmatpush2.bf16.msra.mxu0 0
        %1173 = vmatprep.subr.bf16.mxu0 0
        %1174 = vmatpush2.bf16.msra.mxu0 0
        %1175 = vmatprep.mubr.bf16.mxu0 0
        %1176 = vmatmul.mubr.bf16.gmra.mxu0 %v1138
        %v1177 = vpop.f32.mrf.mxu0
        %v1178 = vadd.f32 0.0, %v1177
        %v1179 = vpop.f32.mrf.mxu0
        %v1180 = vpop.f32.mrf.mxu0
        %v1181 = vadd.f32 0.0, %v1180
        %v1182 = vpop.f32.mrf.mxu0
        %1183 = vmatprep.mubr.bf16.mxu0 0
        %1184 = vmatmul.mubr.bf16.gmra.mxu0 %v1141
        %v1185 = vpop.f32.mrf.mxu0
        %v1186 = vadd.f32 0.0, %v1185
        %v1187 = vpop.f32.mrf.mxu0
        %v1188 = vpop.f32.mrf.mxu0
        %v1189 = vpop.f32.mrf.mxu0
        %1190 = vdwg.mxu0
        %v1191 = vadd.f32 %v1088, %v1178
        %v1192 = vadd.f32 %v1091, %v1181
        %v1193 = vadd.f32 %v1096, %v1186
        %v1194 = vld [vmem:[%s222 + $0xc] sm:$0xf]
        %s1195 = scalar_lea.vmem %s1, 360
        %v1196 = vld [vmem:[%s1195] sm:$0xf]
        %v1197 = vld [vmem:[%s1195 + $0x4] sm:$0xf]
        %v1198 = vld [vmem:[%s1195 + $0x8] sm:$0xf]
        %v1199 = vld [vmem:[%s1195 + $0xc] sm:$0xf]
        %v1200 = vld [vmem:[%s1195 + $0x10] sm:$0xf]
        %v1201 = vld [vmem:[%s1195 + $0x14] sm:$0xf]
        %v1203 = vunpack.c.l.b16 %v1194
        %v1204 = vpack.c.b16 %v1203, %v937
        %v1206 = vshrl.u32 %v1114, 16
        %v1208 = vrot.slane %v1206, 3
        %v1209 = vshll.u32 %v1114, 16
        %v1211 = vrot.slane %v1209, 4
        %v1212 = vor.u32 %v1208, %v1211
        %v1214 = vshrl.u32 %v1204, 16
        %v1216 = vrot.slane %v1214, 3
        %v1217 = vshll.u32 %v1204, 16
        %v1219 = vrot.slane %v1217, 4
        %v1220 = vor.u32 %v1216, %v1219
        %v1221 = vsel %vm480, %v1212, %v1220
        %v1228 = vunpack.c.l.b16 %v1196
        %v1229 = vunpack.c.l.b16 %v1197
        %v1230 = vunpack.c.l.b16 %v1198
        %v1231 = vunpack.c.l.b16 %v1199
        %v1232 = vunpack.c.l.b16 %v1200
        %v1233 = vunpack.c.l.b16 %v1201
        %v1234 = vpack.c.b16 %v1229, %v1228
        %v1235 = vpack.c.b16 %v1231, %v1230
        %v1236 = vpack.c.b16 %v1233, %v1232
        %v1241 = vsel %vm295, %v1221, 0
        %v1244 = vsel %vm295, %v1220, 0
        %1246 = vmatprep.subr.bf16.mxu0 0
        %1247 = vmatpush1.bf16.msra.mxu0 0
        %1248 = vmatprep.subr.bf16.mxu0 0
        %1249 = vmatpush1.bf16.msra.mxu0 0
        %1250 = vmatprep.subr.bf16.mxu0 0
        %1251 = vmatpush1.bf16.msra.mxu0 0
        %1252 = vmatprep.subr.bf16.mxu0 0
        %1253 = vmatpush1.bf16.msra.mxu0 0
        %1254 = vmatprep.subr.bf16.mxu0 0
        %1255 = vmatpush1.bf16.msra.mxu0 0
        %1256 = vmatprep.subr.bf16.mxu0 0
        %1257 = vmatpush1.bf16.msra.mxu0 %v1236
        %1258 = vmatprep.subr.bf16.mxu0 0
        %1259 = vmatpush1.bf16.msra.mxu0 %v1235
        %1260 = vmatprep.subr.bf16.mxu0 0
        %1261 = vmatpush1.bf16.msra.mxu0 %v1234
        %1262 = vmatprep.subr.bf16.mxu0 0
        %1263 = vmatpush2.bf16.msra.mxu0 0
        %1264 = vmatprep.subr.bf16.mxu0 0
        %1265 = vmatpush2.bf16.msra.mxu0 0
        %1266 = vmatprep.subr.bf16.mxu0 0
        %1267 = vmatpush2.bf16.msra.mxu0 0
        %1268 = vmatprep.subr.bf16.mxu0 0
        %1269 = vmatpush2.bf16.msra.mxu0 0
        %1270 = vmatprep.subr.bf16.mxu0 0
        %1271 = vmatpush2.bf16.msra.mxu0 0
        %1272 = vmatprep.subr.bf16.mxu0 0
        %1273 = vmatpush2.bf16.msra.mxu0 0
        %1274 = vmatprep.subr.bf16.mxu0 0
        %1275 = vmatpush2.bf16.msra.mxu0 0
        %1276 = vmatprep.subr.bf16.mxu0 0
        %1277 = vmatpush2.bf16.msra.mxu0 0
        %1278 = vmatprep.mubr.bf16.mxu0 0
        %1279 = vmatmul.mubr.bf16.gmra.mxu0 %v1241
        %v1280 = vpop.f32.mrf.mxu0
        %v1281 = vadd.f32 0.0, %v1280
        %v1282 = vpop.f32.mrf.mxu0
        %v1283 = vpop.f32.mrf.mxu0
        %v1284 = vadd.f32 0.0, %v1283
        %v1285 = vpop.f32.mrf.mxu0
        %1286 = vmatprep.mubr.bf16.mxu0 0
        %1287 = vmatmul.mubr.bf16.gmra.mxu0 %v1244
        %v1288 = vpop.f32.mrf.mxu0
        %v1289 = vadd.f32 0.0, %v1288
        %v1290 = vpop.f32.mrf.mxu0
        %v1291 = vpop.f32.mrf.mxu0
        %v1292 = vpop.f32.mrf.mxu0
        %1293 = vdwg.mxu0
        %v1294 = vadd.f32 %v1191, %v1281
        %v1295 = vadd.f32 %v1192, %v1284
        %v1296 = vadd.f32 %v1193, %v1289
        %v1297 = vld [vmem:[%s2] sm:$0x1]
        %v1299 = vlaneseq
        %v1300 = vshrl.u32 %v1299, 7
        %v1301 = vsub.s32 0, %v1300
        %v1302 = vrot.slane %v1297, %v1301
        %v1304 = vadd.f32 %v1294, %v1302
        %v1305 = vadd.f32 %v1295, %v1302
        %v1306 = vadd.f32 %v1296, %v1302
        %v1307 = vsel %vm670, %v1304, 0.0
        %v1308 = vsel %vm671, %v1305, 0.0
        %v1309 = vsel %vm672, %v1306, 0.0
        %v1310 = vpack.c.bf16 %v1308, %v1307
        %v1311 = vpack.c.bf16 %v1309, %v1309
        %v1314 = vunpack.c.l.b16 %v1310
        %v1315 = vunpack.c.h.b16 %v1310
        %v1316 = vunpack.c.l.b16 %v1311
        %v1317 = vpack.c.b16 %v1314, %v1314
        %v1318 = vpack.c.b16 %v1315, %v1315
        %v1319 = vpack.c.b16 %v1316, %v1316
        %s1323 = scalar_lea.vmem [#allocation2], 60
        %1324 = vst.msk [vmem:[%s1323] sm:$0xf] %vm224, %v1317
        %1325 = vst.msk [vmem:[%s1323 + $0x4] sm:$0xf] %vm224, %v1318
        %1326 = vst.msk [vmem:[%s1323 + $0x8] sm:$0xf] %vm224, %v1319
        %v1327 = vld [vmem:[#allocation2] sm:$0xf]
        %v1328 = vld [vmem:[#allocation2 + $0x4] sm:$0xf]
        %v1329 = vld [vmem:[#allocation2 + $0x8] sm:$0xf]
        %v1330 = vld [vmem:[%s3] sm:$0xf]
        %v1331 = vld [vmem:[%s3 + $0x4] sm:$0xf]
        %v1332 = vld [vmem:[%s698] sm:$0xf]
        %v1333 = vld [vmem:[%s698 + $0x4] sm:$0xf]
        %v1334 = vld [vmem:[%s698 + $0x8] sm:$0xf]
        %s1335 = scalar_lea.vmem %s3, 8
        %v1336 = vld [vmem:[%s1335] sm:$0xf]
        %v1337 = vld [vmem:[%s1335 + $0x4] sm:$0xf]
        %v1341 = vunpack.c.l.b16 %v1332
        %v1342 = vunpack.c.l.b16 %v1333
        %v1343 = vunpack.c.l.b16 %v1334
        %v1344 = vpack.c.b16 %v1342, %v1341
        %v1345 = vpack.c.b16 %v1343, %v1343
        %v1348 = vunpack.c.l.b16 %v1336
        %v1349 = vunpack.c.l.b16 %v1337
        %v1350 = vpack.c.b16 %v1349, %v1348
        %vm1352 = vcmask 130048
        %v1354 = vsel %vm1352, %v1344, 0
        %v1357 = vsel %vm1352, %v1345, 0
        %1359 = vmatprep.subr.bf16.mxu0 0
        %1360 = vmatpush1.bf16.msra.mxu0 0
        %1361 = vmatprep.subr.bf16.mxu0 0
        %1362 = vmatpush1.bf16.msra.mxu0 0
        %1363 = vmatprep.subr.bf16.mxu0 0
        %1364 = vmatpush1.bf16.msra.mxu0 0
        %1365 = vmatprep.subr.bf16.mxu0 0
        %1366 = vmatpush1.bf16.msra.mxu0 0
        %1367 = vmatprep.subr.bf16.mxu0 0
        %1368 = vmatpush1.bf16.msra.mxu0 0
        %1369 = vmatprep.subr.bf16.mxu0 0
        %1370 = vmatpush1.bf16.msra.mxu0 0
        %1371 = vmatprep.subr.bf16.mxu0 0
        %1372 = vmatpush1.bf16.msra.mxu0 0
        %1373 = vmatprep.subr.bf16.mxu0 0
        %1374 = vmatpush1.bf16.msra.mxu0 %v1350
        %1375 = vmatprep.subr.bf16.mxu0 0
        %1376 = vmatpush2.bf16.msra.mxu0 0
        %1377 = vmatprep.subr.bf16.mxu0 0
        %1378 = vmatpush2.bf16.msra.mxu0 0
        %1379 = vmatprep.subr.bf16.mxu0 0
        %1380 = vmatpush2.bf16.msra.mxu0 0
        %1381 = vmatprep.subr.bf16.mxu0 0
        %1382 = vmatpush2.bf16.msra.mxu0 0
        %1383 = vmatprep.subr.bf16.mxu0 0
        %1384 = vmatpush2.bf16.msra.mxu0 0
        %1385 = vmatprep.subr.bf16.mxu0 0
        %1386 = vmatpush2.bf16.msra.mxu0 0
        %1387 = vmatprep.subr.bf16.mxu0 0
        %1388 = vmatpush2.bf16.msra.mxu0 0
        %1389 = vmatprep.subr.bf16.mxu0 0
        %1390 = vmatpush2.bf16.msra.mxu0 0
        %1391 = vmatprep.mubr.bf16.mxu0 0
        %1392 = vmatmul.mubr.bf16.gmra.mxu0 %v1354
        %v1393 = vpop.f32.mrf.mxu0
        %v1394 = vadd.f32 0.0, %v1393
        %v1395 = vpop.f32.mrf.mxu0
        %v1396 = vpop.f32.mrf.mxu0
        %v1397 = vadd.f32 0.0, %v1396
        %v1398 = vpop.f32.mrf.mxu0
        %1399 = vmatprep.mubr.bf16.mxu0 0
        %1400 = vmatmul.mubr.bf16.gmra.mxu0 %v1357
        %v1401 = vpop.f32.mrf.mxu0
        %v1402 = vadd.f32 0.0, %v1401
        %v1403 = vpop.f32.mrf.mxu0
        %v1404 = vpop.f32.mrf.mxu0
        %v1405 = vpop.f32.mrf.mxu0
        %1406 = vdwg.mxu0
        %v1410 = vunpack.c.l.b16 %v1327
        %v1411 = vunpack.c.l.b16 %v1328
        %v1412 = vunpack.c.l.b16 %v1329
        %v1413 = vpack.c.b16 %v1411, %v1410
        %v1414 = vpack.c.b16 %v1412, %v1412
        %v1417 = vunpack.c.l.b16 %v1330
        %v1418 = vunpack.c.l.b16 %v1331
        %v1419 = vpack.c.b16 %v1418, %v1417
        %v1422 = vsel %vm1352, %v1413, 0
        %v1425 = vsel %vm1352, %v1414, 0
        %1427 = vmatprep.subr.bf16.mxu0 0
        %1428 = vmatpush1.bf16.msra.mxu0 0
        %1429 = vmatprep.subr.bf16.mxu0 0
        %1430 = vmatpush1.bf16.msra.mxu0 0
        %1431 = vmatprep.subr.bf16.mxu0 0
        %1432 = vmatpush1.bf16.msra.mxu0 0
        %1433 = vmatprep.subr.bf16.mxu0 0
        %1434 = vmatpush1.bf16.msra.mxu0 0
        %1435 = vmatprep.subr.bf16.mxu0 0
        %1436 = vmatpush1.bf16.msra.mxu0 0
        %1437 = vmatprep.subr.bf16.mxu0 0
        %1438 = vmatpush1.bf16.msra.mxu0 0
        %1439 = vmatprep.subr.bf16.mxu0 0
        %1440 = vmatpush1.bf16.msra.mxu0 0
        %1441 = vmatprep.subr.bf16.mxu0 0
        %1442 = vmatpush1.bf16.msra.mxu0 %v1419
        %1443 = vmatprep.subr.bf16.mxu0 0
        %1444 = vmatpush2.bf16.msra.mxu0 0
        %1445 = vmatprep.subr.bf16.mxu0 0
        %1446 = vmatpush2.bf16.msra.mxu0 0
        %1447 = vmatprep.subr.bf16.mxu0 0
        %1448 = vmatpush2.bf16.msra.mxu0 0
        %1449 = vmatprep.subr.bf16.mxu0 0
        %1450 = vmatpush2.bf16.msra.mxu0 0
        %1451 = vmatprep.subr.bf16.mxu0 0
        %1452 = vmatpush2.bf16.msra.mxu0 0
        %1453 = vmatprep.subr.bf16.mxu0 0
        %1454 = vmatpush2.bf16.msra.mxu0 0
        %1455 = vmatprep.subr.bf16.mxu0 0
        %1456 = vmatpush2.bf16.msra.mxu0 0
        %1457 = vmatprep.subr.bf16.mxu0 0
        %1458 = vmatpush2.bf16.msra.mxu0 0
        %1459 = vmatprep.mubr.bf16.mxu0 0
        %1460 = vmatmul.mubr.bf16.gmra.mxu0 %v1422
        %v1461 = vpop.f32.mrf.mxu0
        %v1462 = vadd.f32 %v1394, %v1461
        %v1463 = vpop.f32.mrf.mxu0
        %v1464 = vpop.f32.mrf.mxu0
        %v1465 = vadd.f32 %v1397, %v1464
        %v1466 = vpop.f32.mrf.mxu0
        %1467 = vmatprep.mubr.bf16.mxu0 0
        %1468 = vmatmul.mubr.bf16.gmra.mxu0 %v1425
        %v1469 = vpop.f32.mrf.mxu0
        %v1470 = vadd.f32 %v1402, %v1469
        %v1471 = vpop.f32.mrf.mxu0
        %v1472 = vpop.f32.mrf.mxu0
        %v1473 = vpop.f32.mrf.mxu0
        %1474 = vdwg.mxu0
        %v1475 = vld [vmem:[#allocation2] sm:$0xf]
        %v1476 = vld [vmem:[#allocation2 + $0x4] sm:$0xf]
        %v1477 = vld [vmem:[#allocation2 + $0x8] sm:$0xf]
        %v1478 = vld [vmem:[#allocation2 + $0xc] sm:$0x1]
        %s1479 = scalar_lea.vmem %s3, 16
        %v1480 = vld [vmem:[%s1479] sm:$0xf]
        %v1481 = vld [vmem:[%s1479 + $0x4] sm:$0xf]
        %v1486 = vunpack.c.l.b16 %v1475
        %v1487 = vunpack.c.l.b16 %v1476
        %v1488 = vunpack.c.l.b16 %v1477
        %v1489 = vunpack.c.l.b16 %v1478
        %v1490 = vpack.c.b16 %v1487, %v1486
        %v1491 = vpack.c.b16 %v1489, %v1488
        %v1493 = vshrl.u32 %v1490, 16
        %v1495 = vshll.u32 %v1490, 16
        %v1497 = vrot.slane %v1495, 1
        %v1498 = vor.u32 %v1493, %v1497
        %v1500 = vshll.u32 %v1491, 16
        %v1502 = vrot.slane %v1500, 1
        %v1503 = vsel %vm941, %v1498, %v1502
        %v1504 = vshrl.u32 %v1491, 16
        %v1506 = vor.u32 %v1504, %v1502
        %v1509 = vunpack.c.l.b16 %v1480
        %v1510 = vunpack.c.l.b16 %v1481
        %v1511 = vpack.c.b16 %v1510, %v1509
        %v1514 = vsel %vm1352, %v1503, 0
        %v1517 = vsel %vm1352, %v1506, 0
        %1519 = vmatprep.subr.bf16.mxu0 0
        %1520 = vmatpush1.bf16.msra.mxu0 0
        %1521 = vmatprep.subr.bf16.mxu0 0
        %1522 = vmatpush1.bf16.msra.mxu0 0
        %1523 = vmatprep.subr.bf16.mxu0 0
        %1524 = vmatpush1.bf16.msra.mxu0 0
        %1525 = vmatprep.subr.bf16.mxu0 0
        %1526 = vmatpush1.bf16.msra.mxu0 0
        %1527 = vmatprep.subr.bf16.mxu0 0
        %1528 = vmatpush1.bf16.msra.mxu0 0
        %1529 = vmatprep.subr.bf16.mxu0 0
        %1530 = vmatpush1.bf16.msra.mxu0 0
        %1531 = vmatprep.subr.bf16.mxu0 0
        %1532 = vmatpush1.bf16.msra.mxu0 0
        %1533 = vmatprep.subr.bf16.mxu0 0
        %1534 = vmatpush1.bf16.msra.mxu0 %v1511
        %1535 = vmatprep.subr.bf16.mxu0 0
        %1536 = vmatpush2.bf16.msra.mxu0 0
        %1537 = vmatprep.subr.bf16.mxu0 0
        %1538 = vmatpush2.bf16.msra.mxu0 0
        %1539 = vmatprep.subr.bf16.mxu0 0
        %1540 = vmatpush2.bf16.msra.mxu0 0
        %1541 = vmatprep.subr.bf16.mxu0 0
        %1542 = vmatpush2.bf16.msra.mxu0 0
        %1543 = vmatprep.subr.bf16.mxu0 0
        %1544 = vmatpush2.bf16.msra.mxu0 0
        %1545 = vmatprep.subr.bf16.mxu0 0
        %1546 = vmatpush2.bf16.msra.mxu0 0
        %1547 = vmatprep.subr.bf16.mxu0 0
        %1548 = vmatpush2.bf16.msra.mxu0 0
        %1549 = vmatprep.subr.bf16.mxu0 0
        %1550 = vmatpush2.bf16.msra.mxu0 0
        %1551 = vmatprep.mubr.bf16.mxu0 0
        %1552 = vmatmul.mubr.bf16.gmra.mxu0 %v1514
        %v1553 = vpop.f32.mrf.mxu0
        %v1554 = vadd.f32 0.0, %v1553
        %v1555 = vpop.f32.mrf.mxu0
        %v1556 = vpop.f32.mrf.mxu0
        %v1557 = vadd.f32 0.0, %v1556
        %v1558 = vpop.f32.mrf.mxu0
        %1559 = vmatprep.mubr.bf16.mxu0 0
        %1560 = vmatmul.mubr.bf16.gmra.mxu0 %v1517
        %v1561 = vpop.f32.mrf.mxu0
        %v1562 = vadd.f32 0.0, %v1561
        %v1563 = vpop.f32.mrf.mxu0
        %v1564 = vpop.f32.mrf.mxu0
        %v1565 = vpop.f32.mrf.mxu0
        %1566 = vdwg.mxu0
        %v1567 = vadd.f32 %v1462, %v1554
        %v1568 = vadd.f32 %v1465, %v1557
        %v1569 = vadd.f32 %v1470, %v1562
        %v1570 = vld [vmem:[%s909] sm:$0xf]
        %v1571 = vld [vmem:[%s909 + $0x4] sm:$0xf]
        %v1572 = vld [vmem:[%s909 + $0x8] sm:$0xf]
        %s1573 = scalar_lea.vmem %s3, 24
        %v1574 = vld [vmem:[%s1573] sm:$0xf]
        %v1575 = vld [vmem:[%s1573 + $0x4] sm:$0xf]
        %v1579 = vunpack.c.l.b16 %v1570
        %v1580 = vunpack.c.l.b16 %v1571
        %v1581 = vunpack.c.l.b16 %v1572
        %v1582 = vpack.c.b16 %v1580, %v1579
        %v1583 = vpack.c.b16 %v1581, %v1581
        %v1586 = vunpack.c.l.b16 %v1574
        %v1587 = vunpack.c.l.b16 %v1575
        %v1588 = vpack.c.b16 %v1587, %v1586
        %v1591 = vsel %vm1352, %v1582, 0
        %v1594 = vsel %vm1352, %v1583, 0
        %1596 = vmatprep.subr.bf16.mxu0 0
        %1597 = vmatpush1.bf16.msra.mxu0 0
        %1598 = vmatprep.subr.bf16.mxu0 0
        %1599 = vmatpush1.bf16.msra.mxu0 0
        %1600 = vmatprep.subr.bf16.mxu0 0
        %1601 = vmatpush1.bf16.msra.mxu0 0
        %1602 = vmatprep.subr.bf16.mxu0 0
        %1603 = vmatpush1.bf16.msra.mxu0 0
        %1604 = vmatprep.subr.bf16.mxu0 0
        %1605 = vmatpush1.bf16.msra.mxu0 0
        %1606 = vmatprep.subr.bf16.mxu0 0
        %1607 = vmatpush1.bf16.msra.mxu0 0
        %1608 = vmatprep.subr.bf16.mxu0 0
        %1609 = vmatpush1.bf16.msra.mxu0 0
        %1610 = vmatprep.subr.bf16.mxu0 0
        %1611 = vmatpush1.bf16.msra.mxu0 %v1588
        %1612 = vmatprep.subr.bf16.mxu0 0
        %1613 = vmatpush2.bf16.msra.mxu0 0
        %1614 = vmatprep.subr.bf16.mxu0 0
        %1615 = vmatpush2.bf16.msra.mxu0 0
        %1616 = vmatprep.subr.bf16.mxu0 0
        %1617 = vmatpush2.bf16.msra.mxu0 0
        %1618 = vmatprep.subr.bf16.mxu0 0
        %1619 = vmatpush2.bf16.msra.mxu0 0
        %1620 = vmatprep.subr.bf16.mxu0 0
        %1621 = vmatpush2.bf16.msra.mxu0 0
        %1622 = vmatprep.subr.bf16.mxu0 0
        %1623 = vmatpush2.bf16.msra.mxu0 0
        %1624 = vmatprep.subr.bf16.mxu0 0
        %1625 = vmatpush2.bf16.msra.mxu0 0
        %1626 = vmatprep.subr.bf16.mxu0 0
        %1627 = vmatpush2.bf16.msra.mxu0 0
        %1628 = vmatprep.mubr.bf16.mxu0 0
        %1629 = vmatmul.mubr.bf16.gmra.mxu0 %v1591
        %v1630 = vpop.f32.mrf.mxu0
        %v1631 = vadd.f32 0.0, %v1630
        %v1632 = vpop.f32.mrf.mxu0
        %v1633 = vpop.f32.mrf.mxu0
        %v1634 = vadd.f32 0.0, %v1633
        %v1635 = vpop.f32.mrf.mxu0
        %1636 = vmatprep.mubr.bf16.mxu0 0
        %1637 = vmatmul.mubr.bf16.gmra.mxu0 %v1594
        %v1638 = vpop.f32.mrf.mxu0
        %v1639 = vadd.f32 0.0, %v1638
        %v1640 = vpop.f32.mrf.mxu0
        %v1641 = vpop.f32.mrf.mxu0
        %v1642 = vpop.f32.mrf.mxu0
        %1643 = vdwg.mxu0
        %v1644 = vadd.f32 %v1567, %v1631
        %v1645 = vadd.f32 %v1568, %v1634
        %v1646 = vadd.f32 %v1569, %v1639
        %v1647 = vld [vmem:[%s1323] sm:$0xf]
        %v1648 = vld [vmem:[%s1323 + $0x4] sm:$0xf]
        %v1649 = vld [vmem:[%s1323 + $0x8] sm:$0xf]
        %s1650 = scalar_lea.vmem %s3, 32
        %v1651 = vld [vmem:[%s1650] sm:$0xf]
        %v1652 = vld [vmem:[%s1650 + $0x4] sm:$0xf]
        %v1656 = vunpack.c.l.b16 %v1647
        %v1657 = vunpack.c.l.b16 %v1648
        %v1658 = vunpack.c.l.b16 %v1649
        %v1659 = vpack.c.b16 %v1657, %v1656
        %v1660 = vpack.c.b16 %v1658, %v1658
        %v1663 = vunpack.c.l.b16 %v1651
        %v1664 = vunpack.c.l.b16 %v1652
        %v1665 = vpack.c.b16 %v1664, %v1663
        %v1668 = vsel %vm1352, %v1659, 0
        %v1671 = vsel %vm1352, %v1660, 0
        %1673 = vmatprep.subr.bf16.mxu0 0
        %1674 = vmatpush1.bf16.msra.mxu0 0
        %1675 = vmatprep.subr.bf16.mxu0 0
        %1676 = vmatpush1.bf16.msra.mxu0 0
        %1677 = vmatprep.subr.bf16.mxu0 0
        %1678 = vmatpush1.bf16.msra.mxu0 0
        %1679 = vmatprep.subr.bf16.mxu0 0
        %1680 = vmatpush1.bf16.msra.mxu0 0
        %1681 = vmatprep.subr.bf16.mxu0 0
        %1682 = vmatpush1.bf16.msra.mxu0 0
        %1683 = vmatprep.subr.bf16.mxu0 0
        %1684 = vmatpush1.bf16.msra.mxu0 0
        %1685 = vmatprep.subr.bf16.mxu0 0
        %1686 = vmatpush1.bf16.msra.mxu0 0
        %1687 = vmatprep.subr.bf16.mxu0 0
        %1688 = vmatpush1.bf16.msra.mxu0 %v1665
        %1689 = vmatprep.subr.bf16.mxu0 0
        %1690 = vmatpush2.bf16.msra.mxu0 0
        %1691 = vmatprep.subr.bf16.mxu0 0
        %1692 = vmatpush2.bf16.msra.mxu0 0
        %1693 = vmatprep.subr.bf16.mxu0 0
        %1694 = vmatpush2.bf16.msra.mxu0 0
        %1695 = vmatprep.subr.bf16.mxu0 0
        %1696 = vmatpush2.bf16.msra.mxu0 0
        %1697 = vmatprep.subr.bf16.mxu0 0
        %1698 = vmatpush2.bf16.msra.mxu0 0
        %1699 = vmatprep.subr.bf16.mxu0 0
        %1700 = vmatpush2.bf16.msra.mxu0 0
        %1701 = vmatprep.subr.bf16.mxu0 0
        %1702 = vmatpush2.bf16.msra.mxu0 0
        %1703 = vmatprep.subr.bf16.mxu0 0
        %1704 = vmatpush2.bf16.msra.mxu0 0
        %1705 = vmatprep.mubr.bf16.mxu0 0
        %1706 = vmatmul.mubr.bf16.gmra.mxu0 %v1668
        %v1707 = vpop.f32.mrf.mxu0
        %v1708 = vadd.f32 0.0, %v1707
        %v1709 = vpop.f32.mrf.mxu0
        %v1710 = vpop.f32.mrf.mxu0
        %v1711 = vadd.f32 0.0, %v1710
        %v1712 = vpop.f32.mrf.mxu0
        %1713 = vmatprep.mubr.bf16.mxu0 0
        %1714 = vmatmul.mubr.bf16.gmra.mxu0 %v1671
        %v1715 = vpop.f32.mrf.mxu0
        %v1716 = vadd.f32 0.0, %v1715
        %v1717 = vpop.f32.mrf.mxu0
        %v1718 = vpop.f32.mrf.mxu0
        %v1719 = vpop.f32.mrf.mxu0
        %1720 = vdwg.mxu0
        %v1721 = vadd.f32 %v1644, %v1708
        %v1722 = vadd.f32 %v1645, %v1711
        %v1723 = vadd.f32 %v1646, %v1716
        %v1724 = vld [vmem:[%s909] sm:$0xf]
        %v1725 = vld [vmem:[%s909 + $0x4] sm:$0xf]
        %v1726 = vld [vmem:[%s909 + $0x8] sm:$0xf]
        %v1727 = vld [vmem:[%s909 + $0xc] sm:$0x1]
        %s1728 = scalar_lea.vmem %s3, 40
        %v1729 = vld [vmem:[%s1728] sm:$0xf]
        %v1730 = vld [vmem:[%s1728 + $0x4] sm:$0xf]
        %v1735 = vunpack.c.l.b16 %v1724
        %v1736 = vunpack.c.l.b16 %v1725
        %v1737 = vunpack.c.l.b16 %v1726
        %v1738 = vunpack.c.l.b16 %v1727
        %v1739 = vpack.c.b16 %v1736, %v1735
        %v1740 = vpack.c.b16 %v1738, %v1737
        %v1742 = vshrl.u32 %v1739, 16
        %v1744 = vshll.u32 %v1739, 16
        %v1746 = vrot.slane %v1744, 1
        %v1747 = vor.u32 %v1742, %v1746
        %v1749 = vshll.u32 %v1740, 16
        %v1751 = vrot.slane %v1749, 1
        %v1752 = vsel %vm941, %v1747, %v1751
        %v1753 = vshrl.u32 %v1740, 16
        %v1755 = vor.u32 %v1753, %v1751
        %v1758 = vunpack.c.l.b16 %v1729
        %v1759 = vunpack.c.l.b16 %v1730
        %v1760 = vpack.c.b16 %v1759, %v1758
        %v1763 = vsel %vm1352, %v1752, 0
        %v1766 = vsel %vm1352, %v1755, 0
        %1768 = vmatprep.subr.bf16.mxu0 0
        %1769 = vmatpush1.bf16.msra.mxu0 0
        %1770 = vmatprep.subr.bf16.mxu0 0
        %1771 = vmatpush1.bf16.msra.mxu0 0
        %1772 = vmatprep.subr.bf16.mxu0 0
        %1773 = vmatpush1.bf16.msra.mxu0 0
        %1774 = vmatprep.subr.bf16.mxu0 0
        %1775 = vmatpush1.bf16.msra.mxu0 0
        %1776 = vmatprep.subr.bf16.mxu0 0
        %1777 = vmatpush1.bf16.msra.mxu0 0
        %1778 = vmatprep.subr.bf16.mxu0 0
        %1779 = vmatpush1.bf16.msra.mxu0 0
        %1780 = vmatprep.subr.bf16.mxu0 0
        %1781 = vmatpush1.bf16.msra.mxu0 0
        %1782 = vmatprep.subr.bf16.mxu0 0
        %1783 = vmatpush1.bf16.msra.mxu0 %v1760
        %1784 = vmatprep.subr.bf16.mxu0 0
        %1785 = vmatpush2.bf16.msra.mxu0 0
        %1786 = vmatprep.subr.bf16.mxu0 0
        %1787 = vmatpush2.bf16.msra.mxu0 0
        %1788 = vmatprep.subr.bf16.mxu0 0
        %1789 = vmatpush2.bf16.msra.mxu0 0
        %1790 = vmatprep.subr.bf16.mxu0 0
        %1791 = vmatpush2.bf16.msra.mxu0 0
        %1792 = vmatprep.subr.bf16.mxu0 0
        %1793 = vmatpush2.bf16.msra.mxu0 0
        %1794 = vmatprep.subr.bf16.mxu0 0
        %1795 = vmatpush2.bf16.msra.mxu0 0
        %1796 = vmatprep.subr.bf16.mxu0 0
        %1797 = vmatpush2.bf16.msra.mxu0 0
        %1798 = vmatprep.subr.bf16.mxu0 0
        %1799 = vmatpush2.bf16.msra.mxu0 0
        %1800 = vmatprep.mubr.bf16.mxu0 0
        %1801 = vmatmul.mubr.bf16.gmra.mxu0 %v1763
        %v1802 = vpop.f32.mrf.mxu0
        %v1803 = vadd.f32 0.0, %v1802
        %v1804 = vpop.f32.mrf.mxu0
        %v1805 = vpop.f32.mrf.mxu0
        %v1806 = vadd.f32 0.0, %v1805
        %v1807 = vpop.f32.mrf.mxu0
        %1808 = vmatprep.mubr.bf16.mxu0 0
        %1809 = vmatmul.mubr.bf16.gmra.mxu0 %v1766
        %v1810 = vpop.f32.mrf.mxu0
        %v1811 = vadd.f32 0.0, %v1810
        %v1812 = vpop.f32.mrf.mxu0
        %v1813 = vpop.f32.mrf.mxu0
        %v1814 = vpop.f32.mrf.mxu0
        %1815 = vdwg.mxu0
        %v1816 = vadd.f32 %v1721, %v1803
        %v1817 = vadd.f32 %v1722, %v1806
        %v1818 = vadd.f32 %v1723, %v1811
        %v1819 = vld [vmem:[#allocation2] sm:$0x8]
        %v1820 = vld [vmem:[#allocation2 + $0xc] sm:$0x7]
        %s1821 = scalar_lea.vmem %s3, 48
        %v1822 = vld [vmem:[%s1821] sm:$0xf]
        %v1823 = vld [vmem:[%s1821 + $0x4] sm:$0xf]
        %v1826 = vunpack.c.l.b16 %v1819
        %v1827 = vunpack.c.l.b16 %v1820
        %v1828 = vpack.c.b16 %v1487, %v1826
        %v1829 = vpack.c.b16 %v1827, %v1488
        %v1830 = vrot.slane %v1828, 3
        %v1831 = vrot.slane %v1829, 3
        %v1832 = vsel %vm273, %v1830, %v1831
        %v1835 = vunpack.c.l.b16 %v1822
        %v1836 = vunpack.c.l.b16 %v1823
        %v1837 = vpack.c.b16 %v1836, %v1835
        %v1840 = vsel %vm1352, %v1832, 0
        %v1843 = vsel %vm1352, %v1831, 0
        %1845 = vmatprep.subr.bf16.mxu0 0
        %1846 = vmatpush1.bf16.msra.mxu0 0
        %1847 = vmatprep.subr.bf16.mxu0 0
        %1848 = vmatpush1.bf16.msra.mxu0 0
        %1849 = vmatprep.subr.bf16.mxu0 0
        %1850 = vmatpush1.bf16.msra.mxu0 0
        %1851 = vmatprep.subr.bf16.mxu0 0
        %1852 = vmatpush1.bf16.msra.mxu0 0
        %1853 = vmatprep.subr.bf16.mxu0 0
        %1854 = vmatpush1.bf16.msra.mxu0 0
        %1855 = vmatprep.subr.bf16.mxu0 0
        %1856 = vmatpush1.bf16.msra.mxu0 0
        %1857 = vmatprep.subr.bf16.mxu0 0
        %1858 = vmatpush1.bf16.msra.mxu0 0
        %1859 = vmatprep.subr.bf16.mxu0 0
        %1860 = vmatpush1.bf16.msra.mxu0 %v1837
        %1861 = vmatprep.subr.bf16.mxu0 0
        %1862 = vmatpush2.bf16.msra.mxu0 0
        %1863 = vmatprep.subr.bf16.mxu0 0
        %1864 = vmatpush2.bf16.msra.mxu0 0
        %1865 = vmatprep.subr.bf16.mxu0 0
        %1866 = vmatpush2.bf16.msra.mxu0 0
        %1867 = vmatprep.subr.bf16.mxu0 0
        %1868 = vmatpush2.bf16.msra.mxu0 0
        %1869 = vmatprep.subr.bf16.mxu0 0
        %1870 = vmatpush2.bf16.msra.mxu0 0
        %1871 = vmatprep.subr.bf16.mxu0 0
        %1872 = vmatpush2.bf16.msra.mxu0 0
        %1873 = vmatprep.subr.bf16.mxu0 0
        %1874 = vmatpush2.bf16.msra.mxu0 0
        %1875 = vmatprep.subr.bf16.mxu0 0
        %1876 = vmatpush2.bf16.msra.mxu0 0
        %1877 = vmatprep.mubr.bf16.mxu0 0
        %1878 = vmatmul.mubr.bf16.gmra.mxu0 %v1840
        %v1879 = vpop.f32.mrf.mxu0
        %v1880 = vadd.f32 0.0, %v1879
        %v1881 = vpop.f32.mrf.mxu0
        %v1882 = vpop.f32.mrf.mxu0
        %v1883 = vadd.f32 0.0, %v1882
        %v1884 = vpop.f32.mrf.mxu0
        %1885 = vmatprep.mubr.bf16.mxu0 0
        %1886 = vmatmul.mubr.bf16.gmra.mxu0 %v1843
        %v1887 = vpop.f32.mrf.mxu0
        %v1888 = vadd.f32 0.0, %v1887
        %v1889 = vpop.f32.mrf.mxu0
        %v1890 = vpop.f32.mrf.mxu0
        %v1891 = vpop.f32.mrf.mxu0
        %1892 = vdwg.mxu0
        %v1893 = vadd.f32 %v1816, %v1880
        %v1894 = vadd.f32 %v1817, %v1883
        %v1895 = vadd.f32 %v1818, %v1888
        %v1896 = vld [vmem:[%s698] sm:$0x8]
        %v1897 = vld [vmem:[%s698 + $0x4] sm:$0xf]
        %v1898 = vld [vmem:[%s698 + $0x8] sm:$0xf]
        %v1899 = vld [vmem:[%s698 + $0xc] sm:$0x7]
        %s1900 = scalar_lea.vmem %s3, 56
        %v1901 = vld [vmem:[%s1900] sm:$0xf]
        %v1902 = vld [vmem:[%s1900 + $0x4] sm:$0xf]
        %v1907 = vunpack.c.l.b16 %v1896
        %v1908 = vunpack.c.l.b16 %v1897
        %v1909 = vunpack.c.l.b16 %v1898
        %v1910 = vunpack.c.l.b16 %v1899
        %v1911 = vpack.c.b16 %v1908, %v1907
        %v1912 = vpack.c.b16 %v1910, %v1909
        %v1913 = vrot.slane %v1911, 3
        %v1914 = vrot.slane %v1912, 3
        %v1915 = vsel %vm273, %v1913, %v1914
        %v1918 = vunpack.c.l.b16 %v1901
        %v1919 = vunpack.c.l.b16 %v1902
        %v1920 = vpack.c.b16 %v1919, %v1918
        %v1923 = vsel %vm1352, %v1915, 0
        %v1926 = vsel %vm1352, %v1914, 0
        %1928 = vmatprep.subr.bf16.mxu0 0
        %1929 = vmatpush1.bf16.msra.mxu0 0
        %1930 = vmatprep.subr.bf16.mxu0 0
        %1931 = vmatpush1.bf16.msra.mxu0 0
        %1932 = vmatprep.subr.bf16.mxu0 0
        %1933 = vmatpush1.bf16.msra.mxu0 0
        %1934 = vmatprep.subr.bf16.mxu0 0
        %1935 = vmatpush1.bf16.msra.mxu0 0
        %1936 = vmatprep.subr.bf16.mxu0 0
        %1937 = vmatpush1.bf16.msra.mxu0 0
        %1938 = vmatprep.subr.bf16.mxu0 0
        %1939 = vmatpush1.bf16.msra.mxu0 0
        %1940 = vmatprep.subr.bf16.mxu0 0
        %1941 = vmatpush1.bf16.msra.mxu0 0
        %1942 = vmatprep.subr.bf16.mxu0 0
        %1943 = vmatpush1.bf16.msra.mxu0 %v1920
        %1944 = vmatprep.subr.bf16.mxu0 0
        %1945 = vmatpush2.bf16.msra.mxu0 0
        %1946 = vmatprep.subr.bf16.mxu0 0
        %1947 = vmatpush2.bf16.msra.mxu0 0
        %1948 = vmatprep.subr.bf16.mxu0 0
        %1949 = vmatpush2.bf16.msra.mxu0 0
        %1950 = vmatprep.subr.bf16.mxu0 0
        %1951 = vmatpush2.bf16.msra.mxu0 0
        %1952 = vmatprep.subr.bf16.mxu0 0
        %1953 = vmatpush2.bf16.msra.mxu0 0
        %1954 = vmatprep.subr.bf16.mxu0 0
        %1955 = vmatpush2.bf16.msra.mxu0 0
        %1956 = vmatprep.subr.bf16.mxu0 0
        %1957 = vmatpush2.bf16.msra.mxu0 0
        %1958 = vmatprep.subr.bf16.mxu0 0
        %1959 = vmatpush2.bf16.msra.mxu0 0
        %1960 = vmatprep.mubr.bf16.mxu0 0
        %1961 = vmatmul.mubr.bf16.gmra.mxu0 %v1923
        %v1962 = vpop.f32.mrf.mxu0
        %v1963 = vadd.f32 0.0, %v1962
        %v1964 = vpop.f32.mrf.mxu0
        %v1965 = vpop.f32.mrf.mxu0
        %v1966 = vadd.f32 0.0, %v1965
        %v1967 = vpop.f32.mrf.mxu0
        %1968 = vmatprep.mubr.bf16.mxu0 0
        %1969 = vmatmul.mubr.bf16.gmra.mxu0 %v1926
        %v1970 = vpop.f32.mrf.mxu0
        %v1971 = vadd.f32 0.0, %v1970
        %v1972 = vpop.f32.mrf.mxu0
        %v1973 = vpop.f32.mrf.mxu0
        %v1974 = vpop.f32.mrf.mxu0
        %1975 = vdwg.mxu0
        %v1976 = vadd.f32 %v1893, %v1963
        %v1977 = vadd.f32 %v1894, %v1966
        %v1978 = vadd.f32 %v1895, %v1971
        %v1979 = vld [vmem:[#allocation2 + $0xc] sm:$0xf]
        %s1980 = scalar_lea.vmem %s3, 64
        %v1981 = vld [vmem:[%s1980] sm:$0xf]
        %v1982 = vld [vmem:[%s1980 + $0x4] sm:$0xf]
        %v1984 = vunpack.c.l.b16 %v1979
        %v1985 = vpack.c.b16 %v1984, %v1488
        %v1987 = vshrl.u32 %v1828, 16
        %v1989 = vrot.slane %v1987, 3
        %v1990 = vshll.u32 %v1828, 16
        %v1992 = vrot.slane %v1990, 4
        %v1993 = vor.u32 %v1989, %v1992
        %v1995 = vshrl.u32 %v1985, 16
        %v1997 = vrot.slane %v1995, 3
        %v1998 = vshll.u32 %v1985, 16
        %v2000 = vrot.slane %v1998, 4
        %v2001 = vor.u32 %v1997, %v2000
        %v2002 = vsel %vm480, %v1993, %v2001
        %v2005 = vunpack.c.l.b16 %v1981
        %v2006 = vunpack.c.l.b16 %v1982
        %v2007 = vpack.c.b16 %v2006, %v2005
        %v2010 = vsel %vm1352, %v2002, 0
        %v2013 = vsel %vm1352, %v2001, 0
        %2015 = vmatprep.subr.bf16.mxu0 0
        %2016 = vmatpush1.bf16.msra.mxu0 0
        %2017 = vmatprep.subr.bf16.mxu0 0
        %2018 = vmatpush1.bf16.msra.mxu0 0
        %2019 = vmatprep.subr.bf16.mxu0 0
        %2020 = vmatpush1.bf16.msra.mxu0 0
        %2021 = vmatprep.subr.bf16.mxu0 0
        %2022 = vmatpush1.bf16.msra.mxu0 0
        %2023 = vmatprep.subr.bf16.mxu0 0
        %2024 = vmatpush1.bf16.msra.mxu0 0
        %2025 = vmatprep.subr.bf16.mxu0 0
        %2026 = vmatpush1.bf16.msra.mxu0 0
        %2027 = vmatprep.subr.bf16.mxu0 0
        %2028 = vmatpush1.bf16.msra.mxu0 0
        %2029 = vmatprep.subr.bf16.mxu0 0
        %2030 = vmatpush1.bf16.msra.mxu0 %v2007
        %2031 = vmatprep.subr.bf16.mxu0 0
        %2032 = vmatpush2.bf16.msra.mxu0 0
        %2033 = vmatprep.subr.bf16.mxu0 0
        %2034 = vmatpush2.bf16.msra.mxu0 0
        %2035 = vmatprep.subr.bf16.mxu0 0
        %2036 = vmatpush2.bf16.msra.mxu0 0
        %2037 = vmatprep.subr.bf16.mxu0 0
        %2038 = vmatpush2.bf16.msra.mxu0 0
        %2039 = vmatprep.subr.bf16.mxu0 0
        %2040 = vmatpush2.bf16.msra.mxu0 0
        %2041 = vmatprep.subr.bf16.mxu0 0
        %2042 = vmatpush2.bf16.msra.mxu0 0
        %2043 = vmatprep.subr.bf16.mxu0 0
        %2044 = vmatpush2.bf16.msra.mxu0 0
        %2045 = vmatprep.subr.bf16.mxu0 0
        %2046 = vmatpush2.bf16.msra.mxu0 0
        %2047 = vmatprep.mubr.bf16.mxu0 0
        %2048 = vmatmul.mubr.bf16.gmra.mxu0 %v2010
        %v2049 = vpop.f32.mrf.mxu0
        %v2050 = vadd.f32 0.0, %v2049
        %v2051 = vpop.f32.mrf.mxu0
        %v2052 = vpop.f32.mrf.mxu0
        %v2053 = vadd.f32 0.0, %v2052
        %v2054 = vpop.f32.mrf.mxu0
        %2055 = vmatprep.mubr.bf16.mxu0 0
        %2056 = vmatmul.mubr.bf16.gmra.mxu0 %v2013
        %v2057 = vpop.f32.mrf.mxu0
        %v2058 = vadd.f32 0.0, %v2057
        %v2059 = vpop.f32.mrf.mxu0
        %v2060 = vpop.f32.mrf.mxu0
        %v2061 = vpop.f32.mrf.mxu0
        %2062 = vdwg.mxu0
        %v2063 = vadd.f32 %v1976, %v2050
        %v2064 = vadd.f32 %v1977, %v2053
        %v2065 = vadd.f32 %v1978, %v2058
        %v2066 = vld [vmem:[%s4] sm:$0x1]
        %v2068 = vlaneseq
        %v2069 = vshrl.u32 %v2068, 7
        %v2070 = vsub.s32 0, %v2069
        %v2071 = vrot.slane %v2066, %v2070
        %v2073 = vadd.f32 %v2063, %v2071
        %v2074 = vadd.f32 %v2064, %v2071
        %v2075 = vadd.f32 %v2065, %v2071
        %vm2076 = vcmask 257024
        %2077 = vst.msk [vmem:[%s217] sm:$0xf] %vm2076, %v2073
        %s2078 = scalar_lea.vmem %s217, 4 [#allocation3]
        %vm2079 = vcmask 261126
        %2080 = vst.msk [vmem:[%s2078 - $0x6] sm:$0xc0] %vm2079, %v2073
        %vm2081 = vcmask 254976
        %2082 = vst.msk [vmem:[%s2078 + $0x2] sm:$0x3] %vm2081, %v2074
        %s2083 = scalar_lea.vmem %s217, 8 [#allocation3]
        %vm2084 = vcmask 261124
        %2085 = vst.msk [vmem:[%s2083 - $0x4] sm:$0xf0] %vm2084, %v2074
        %s2086 = scalar_lea.vmem %s217, 12 [#allocation3]
        %vm2087 = vcmask 259074
        %2088 = vst.msk [vmem:[%s2086 - $0x2] sm:$0x3c] %vm2087, %v2075
        %s2089 = sand.u32 %s137, 1
        %s2090 = scalar_lea.sflag [#allocation4], %s2089
        %s2091 = sand.u32 %s137, 1
        %s2092 = smul.addr %s2091, 16
        %s2093 = scalar_lea.vmem [#allocation3], %s2092
        // Predicated region
        $region41: #{_lambda_.1} parent=39 // pred_check
          %p2094 = pneg %p147
        $region42: #{_lambda_.1} parent=39 // pred_check_branch
          %2096 = sbr.rel (%p2094) target = $region44
        $region43: #{_lambda_.1} parent=39 // pred_region
          %s2098 = ssub.s32 256, 256
          %2099 = vsyncadd %s2090, %s2098
          %s2100 = smul.addr %s19, 4
          %s2101 = smul.addr %s2100, 64
          %s2102 = scalar_lea.hbm %s5, %s2101
          %s2103 = sshll.u32 %s2093, 4
          %s2104 = int_to_ptr.vmem [resolvable:$true] %s2103
          %2109 = dma.vmem_to_hbm [thread:$0]  %s2104, 256, %s2102, %s2090, 64, 64, 4
        $region44: #{_lambda_.1} parent=39 // pred_fallthru
          _
      $region40: #{_lambda_.1} parent=5 // pred_fallthru
        _
      %p2110 = scmp.le.s32.totalorder 2, %s14
      // Predicated region
      $region45: #{_lambda_.1} parent=5 // pred_check
        %p2111 = pneg %p2110
      $region46: #{_lambda_.1} parent=5 // pred_check_branch
        %2113 = sbr.rel (%p2111) target = $region48
      $region47: #{_lambda_.1} parent=5 // pred_region
        %s2114 = ssub.s32 %s14, 2
        // Predicated region
        $region49: #{_lambda_.1} parent=47 // pred_check
          %p2115 = pneg %p153
        $region50: #{_lambda_.1} parent=47 // pred_check_branch
          %2117 = sbr.rel (%p2115) target = $region52
        $region51: #{_lambda_.1} parent=47 // pred_region
          %s2118 = sand.u32 %s138, 1
          %s2119 = scalar_lea.sflag [#allocation4], %s2118
          %s2120 = sand.u32 %s138, 1
          %s2121 = smul.addr %s2120, 16
          %s2122 = scalar_lea.vmem [#allocation3], %s2121
          %2123 = dma.done %s2119, 256
        $region52: #{_lambda_.1} parent=47 // pred_fallthru
          _
      $region48: #{_lambda_.1} parent=5 // pred_fallthru
        _
    $region6: #{_lambda_.1} parent=1 // loop_footer
      %s18 = sadd.s32 1, %s14
    $region7: #{_lambda_.1} parent=1 // loop_footer_branch
      %13 = sbr.rel target = $region3
    $region8: #{_lambda_.1} parent=1 // loop_exit
      _
    %2124 = vsyncpa [#allocation4], 1
    %s2125 = scalar_lea.sflag [#allocation4], 1
    %2126 = vsyncpa %s2125, 1

</llo_original>
